<compile_context>
chip_gen: v6e
topology: v6e:2x2x1
jax: 0.10.0
libtpu: 0.0.40
codegen_flags: <defaults>
</compile_context>

<pallas_src>
import jax
import jax.numpy as jnp
from jax.experimental import pallas as pl
from jax.experimental.pallas import tpu as pltpu


def _round_up(x, m):
    return ((x + m - 1) // m) * m


# Below this magnitude a theta/kappa correction cannot move an f32 activation
# that is O(0.01..10); matches the PyTorch f32 reference bit-for-bit in effect.
_CORR_EPS = 1e-10


# ----------------------------------------------------------------------------
# Fused kernel
# ----------------------------------------------------------------------------
def _make_fused_kernel(num_layers, thetas, kappas):
    """Kernel refs layout:
       (x_ref, [w1,b1,w2,b2,w3,b3] * num_layers, out_w, out_b, o_ref)

    Per layer:  z = x @ W1 + b1
                a = relu(z) + theta*z*sin(z) + kappa*z^2*cos(z)   (NKAT)
                h = tanh(a @ W2 + b2) @ W3 + b3
    Final:      out = h @ Wout + bout
    """
    use_theta = [abs(float(t)) > _CORR_EPS for t in thetas]
    use_kappa = [abs(float(k)) > _CORR_EPS for k in kappas]

    def kernel(*refs):
        x_ref = refs[0]
        o_ref = refs[-1]
        p = refs[1:-1]

        h = x_ref[...].astype(jnp.float32)
        idx = 0
        for l in range(num_layers):
            w1, b1, w2, b2, w3, b3 = p[idx:idx + 6]
            idx += 6
            # Linear
            z = jnp.dot(h, w1[...], preferred_element_type=jnp.float32) + b1[...]
            # NKAT activation (corrections compiled out when numerically dead)
            a = jnp.maximum(z, jnp.float32(0.0))
            if use_theta[l]:
                a = a + jnp.float32(thetas[l]) * z * jnp.sin(z)
            if use_kappa[l]:
                a = a + jnp.float32(kappas[l]) * (z * z) * jnp.cos(z)
            # nonlinear: Linear -> Tanh -> Linear
            h = jnp.tanh(jnp.dot(a, w2[...], preferred_element_type=jnp.float32)
                         + b2[...])
            h = jnp.dot(h, w3[...], preferred_element_type=jnp.float32) + b3[...]

        out_w, out_b = p[idx], p[idx + 1]
        o_ref[...] = (jnp.dot(h, out_w[...], preferred_element_type=jnp.float32)
                      + out_b[...]).astype(o_ref.dtype)

    return kernel


# ----------------------------------------------------------------------------
# Parameters (mirrors PIKANNetwork.__init__ shapes; deterministic init)
# ----------------------------------------------------------------------------
def init_pikan_params(key, input_dim, hidden_dims, output_dim,
                      theta=1e-25, kappa=1e-15):
    in_pad = _round_up(max(input_dim, 1), 8)       # sublane-friendly K (layer 0)
    out_pad = _round_up(max(output_dim, 1), 128)   # lane-dense output store

    def _lin(k, fan_in, fan_out, fan_in_pad=None, fan_out_pad=None):
        fan_in_pad = fan_in if fan_in_pad is None else fan_in_pad
        fan_out_pad = fan_out if fan_out_pad is None else fan_out_pad
        scale = 1.0 / float(fan_in) ** 0.5         # Kaiming-uniform-ish
        kw, kb = jax.random.split(k)
        w = jax.random.uniform(kw, (fan_in, fan_out), jnp.float32, -scale, scale)
        b = jax.random.uniform(kb, (1, fan_out), jnp.float32, -scale, scale)
        w = jnp.pad(w, ((0, fan_in_pad - fan_in), (0, fan_out_pad - fan_out)))
        b = jnp.pad(b, ((0, 0), (0, fan_out_pad - fan_out)))
        return w, b

    arrays = {"layers": []}
    thetas, kappas = [], []
    cur, cur_pad = input_dim, in_pad
    for h in hidden_dims:
        key, k1, k2, k3 = jax.random.split(key, 4)
        w1, b1 = _lin(k1, cur, h, fan_in_pad=cur_pad)   # self.linear
        w2, b2 = _lin(k2, h, h)                         # nonlinear[0]
        w3, b3 = _lin(k3, h, h)                         # nonlinear[2]
        arrays["layers"].append(dict(w1=w1, b1=b1, w2=w2, b2=b2, w3=w3, b3=b3))
        thetas.append(float(theta))
        kappas.append(float(kappa))
        cur, cur_pad = h, h

    key, ko = jax.random.split(key)
    ow, ob = _lin(ko, cur, output_dim, fan_out_pad=out_pad)  # output_layer
    arrays["out_w"] = ow
    arrays["out_b"] = ob

    meta = dict(input_dim=input_dim, in_pad=in_pad,
                hidden_dims=tuple(int(h) for h in hidden_dims),
                output_dim=output_dim, out_pad=out_pad,
                thetas=tuple(thetas), kappas=tuple(kappas))
    return arrays, meta


# ----------------------------------------------------------------------------
# Forward wrapper
# ----------------------------------------------------------------------------
def make_pikan_forward(meta, *, batch_tile=128):
    num_layers = len(meta["hidden_dims"])
    hidden_dims = meta["hidden_dims"]
    in_pad, out_pad = meta["in_pad"], meta["out_pad"]
    input_dim, output_dim = meta["input_dim"], meta["output_dim"]
    use_theta = [abs(t) > _CORR_EPS for t in meta["thetas"]]
    use_kappa = [abs(k) > _CORR_EPS for k in meta["kappas"]]

    kernel = _make_fused_kernel(num_layers, meta["thetas"], meta["kappas"])

    def _cost_estimate(padded_batch, weight_bytes):
        flops, trans = 0, 0
        cur = in_pad
        for i, h in enumerate(hidden_dims):
            flops += 2 * padded_batch * (cur * h + 2 * h * h)
            trans += padded_batch * h                   # tanh
            if use_theta[i]:
                trans += padded_batch * h               # sin
            if use_kappa[i]:
                trans += padded_batch * h               # cos
            cur = h
        flops += 2 * padded_batch * cur * out_pad
        bytes_accessed = (padded_batch * in_pad * 4
                          + padded_batch * out_pad * 4
                          + weight_bytes)
        return pl.CostEstimate(flops=flops, transcendentals=trans,
                               bytes_accessed=bytes_accessed)

    @jax.jit
    def forward(arrays, x):
        batch = x.shape[0]
        padded_batch = _round_up(max(batch, 1), batch_tile)

        # Zero-pad batch rows and input columns (mathematically inert).
        xp = jnp.zeros((padded_batch, in_pad), jnp.float32)
        xp = xp.at[:batch, :input_dim].set(x.astype(jnp.float32))

        weight_args = []
        for lp in arrays["layers"]:
            weight_args += [lp["w1"], lp["b1"], lp["w2"], lp["b2"],
                            lp["w3"], lp["b3"]]
        weight_args += [arrays["out_w"], arrays["out_b"]]
        weight_bytes = sum(int(w.size) * w.dtype.itemsize for w in weight_args)

        grid = (padded_batch // batch_tile,)
        in_specs = [pl.BlockSpec((batch_tile, in_pad), lambda i: (i, 0))]
        # Weights/biases: full-array blocks, constant index_map -> stay resident.
        in_specs += [pl.BlockSpec(w.shape, lambda i: (0, 0)) for w in weight_args]
        out_spec = pl.BlockSpec((batch_tile, out_pad), lambda i: (i, 0))

        out_padded = pl.pallas_call(
            kernel,
            out_shape=jax.ShapeDtypeStruct((padded_batch, out_pad), jnp.float32),
            grid=grid,
            in_specs=in_specs,
            out_specs=out_spec,
            compiler_params=pltpu.CompilerParams(
                dimension_semantics=("parallel",)),
            cost_estimate=_cost_estimate(padded_batch, weight_bytes),
        )(xp, *weight_args)

        return out_padded[:batch, :output_dim]

    return forward


# ----------------------------------------------------------------------------
# Pure-JAX reference (full NKAT math, including the correction terms)
# ----------------------------------------------------------------------------
def pikan_forward_ref(arrays, meta, x):
    h = jnp.pad(x.astype(jnp.float32),
                ((0, 0), (0, meta["in_pad"] - meta["input_dim"])))
    for lp, th, ka in zip(arrays["layers"], meta["thetas"], meta["kappas"]):
        z = h @ lp["w1"] + lp["b1"]
        a = (jnp.maximum(z, 0.0)
             + jnp.float32(th) * z * jnp.sin(z)
             + jnp.float32(ka) * z * z * jnp.cos(z))
        h = jnp.tanh(a @ lp["w2"] + lp["b2"]) @ lp["w3"] + lp["b3"]
    out = h @ arrays["out_w"] + arrays["out_b"]
    return out[:, :meta["output_dim"]]


# ----------------------------------------------------------------------------
if __name__ == "__main__":
    # PIKANConfig defaults: input_dim=4, hidden_dims=[64,128,64], output_dim=1.
    input_dim = 4
    hidden_dims = [64, 128, 64]
    output_dim = 1
    batch = 256   # collocation points -> 2 batch tiles of 128

    root = jax.random.PRNGKey(0)
    k_param, k_x = jax.random.split(root)

    arrays, meta = init_pikan_params(k_param, input_dim, hidden_dims, output_dim,
                                     theta=1e-25, kappa=1e-15)
    x = jax.random.normal(k_x, (batch, input_dim), dtype=jnp.float32)

    forward = make_pikan_forward(meta, batch_tile=128)
    out = jax.block_until_ready(forward(arrays, x))

    ref = pikan_forward_ref(arrays, meta, x)
    assert out.shape == (batch, output_dim)
    assert jnp.allclose(out, ref, atol=1e-5, rtol=1e-5), \
        float(jnp.max(jnp.abs(out - ref)))

    # TODO(synk): compute_physics_loss / compute_total_loss use torch.autograd
    # and are training-time utilities, not part of the forward-pass kernel.

    print("KERNEL_OK")
</pallas_src>

<mosaic_0001>
module attributes {stable_mosaic.version = 11 : i64} {
  func.func @kernel(%arg0: i32, %arg1: memref<128x8xf32, #tpu.memory_space<vmem>>, %arg2: memref<8x64xf32, #tpu.memory_space<vmem>>, %arg3: memref<1x64xf32, #tpu.memory_space<vmem>>, %arg4: memref<64x64xf32, #tpu.memory_space<vmem>>, %arg5: memref<1x64xf32, #tpu.memory_space<vmem>>, %arg6: memref<64x64xf32, #tpu.memory_space<vmem>>, %arg7: memref<1x64xf32, #tpu.memory_space<vmem>>, %arg8: memref<64x128xf32, #tpu.memory_space<vmem>>, %arg9: memref<1x128xf32, #tpu.memory_space<vmem>>, %arg10: memref<128x128xf32, #tpu.memory_space<vmem>>, %arg11: memref<1x128xf32, #tpu.memory_space<vmem>>, %arg12: memref<128x128xf32, #tpu.memory_space<vmem>>, %arg13: memref<1x128xf32, #tpu.memory_space<vmem>>, %arg14: memref<128x64xf32, #tpu.memory_space<vmem>>, %arg15: memref<1x64xf32, #tpu.memory_space<vmem>>, %arg16: memref<64x64xf32, #tpu.memory_space<vmem>>, %arg17: memref<1x64xf32, #tpu.memory_space<vmem>>, %arg18: memref<64x64xf32, #tpu.memory_space<vmem>>, %arg19: memref<1x64xf32, #tpu.memory_space<vmem>>, %arg20: memref<64x128xf32, #tpu.memory_space<vmem>>, %arg21: memref<1x128xf32, #tpu.memory_space<vmem>>, %arg22: memref<128x128xf32, #tpu.memory_space<vmem>>) attributes {dimension_semantics = [#tpu.dimension_semantics<parallel>], iteration_bounds = array<i64: 2>, scalar_prefetch = 0 : i64, scratch_operands = 0 : i64, tpu.core_type = #tpu.core_type<tc>, window_params = [{transform_indices = @transform_0, window_bounds = array<i64: 128, 8>}, {pipeline_mode = #tpu.pipeline_mode<synchronous>, transform_indices = @transform_1, window_bounds = array<i64: 8, 64>}, {pipeline_mode = #tpu.pipeline_mode<synchronous>, transform_indices = @transform_2, window_bounds = array<i64: 1, 64>}, {pipeline_mode = #tpu.pipeline_mode<synchronous>, transform_indices = @transform_3, window_bounds = array<i64: 64, 64>}, {pipeline_mode = #tpu.pipeline_mode<synchronous>, transform_indices = @transform_4, window_bounds = array<i64: 1, 64>}, {pipeline_mode = #tpu.pipeline_mode<synchronous>, transform_indices = @transform_5, window_bounds = array<i64: 64, 64>}, {pipeline_mode = #tpu.pipeline_mode<synchronous>, transform_indices = @transform_6, window_bounds = array<i64: 1, 64>}, {pipeline_mode = #tpu.pipeline_mode<synchronous>, transform_indices = @transform_7, window_bounds = array<i64: 64, 128>}, {pipeline_mode = #tpu.pipeline_mode<synchronous>, transform_indices = @transform_8, window_bounds = array<i64: 1, 128>}, {pipeline_mode = #tpu.pipeline_mode<synchronous>, transform_indices = @transform_9, window_bounds = array<i64: 128, 128>}, {pipeline_mode = #tpu.pipeline_mode<synchronous>, transform_indices = @transform_10, window_bounds = array<i64: 1, 128>}, {pipeline_mode = #tpu.pipeline_mode<synchronous>, transform_indices = @transform_11, window_bounds = array<i64: 128, 128>}, {pipeline_mode = #tpu.pipeline_mode<synchronous>, transform_indices = @transform_12, window_bounds = array<i64: 1, 128>}, {pipeline_mode = #tpu.pipeline_mode<synchronous>, transform_indices = @transform_13, window_bounds = array<i64: 128, 64>}, {pipeline_mode = #tpu.pipeline_mode<synchronous>, transform_indices = @transform_14, window_bounds = array<i64: 1, 64>}, {pipeline_mode = #tpu.pipeline_mode<synchronous>, transform_indices = @transform_15, window_bounds = array<i64: 64, 64>}, {pipeline_mode = #tpu.pipeline_mode<synchronous>, transform_indices = @transform_16, window_bounds = array<i64: 1, 64>}, {pipeline_mode = #tpu.pipeline_mode<synchronous>, transform_indices = @transform_17, window_bounds = array<i64: 64, 64>}, {pipeline_mode = #tpu.pipeline_mode<synchronous>, transform_indices = @transform_18, window_bounds = array<i64: 1, 64>}, {pipeline_mode = #tpu.pipeline_mode<synchronous>, transform_indices = @transform_19, window_bounds = array<i64: 64, 128>}, {pipeline_mode = #tpu.pipeline_mode<synchronous>, transform_indices = @transform_20, window_bounds = array<i64: 1, 128>}, {transform_indices = @transform_21, window_bounds = array<i64: 128, 128>}]} {
    %c0 = arith.constant 0 : index
    %c0_0 = arith.constant 0 : index
    %0 = vector.load %arg1[%c0, %c0_0] : memref<128x8xf32, #tpu.memory_space<vmem>>, vector<128x8xf32>
    %c0_1 = arith.constant 0 : index
    %c0_2 = arith.constant 0 : index
    %1 = vector.load %arg2[%c0_1, %c0_2] : memref<8x64xf32, #tpu.memory_space<vmem>>, vector<8x64xf32>
    %cst = arith.constant dense<0.000000e+00> : vector<128x64xf32>
    %2 = tpu.matmul %0, %1, %cst {dimension_numbers = #tpu.dot_dimension_numbers<[1], [0], [0], [1], [0, 0, 1, 1], [], []>} : vector<128x8xf32>, vector<8x64xf32>, vector<128x64xf32> -> vector<128x64xf32>
    %c0_3 = arith.constant 0 : index
    %c0_4 = arith.constant 0 : index
    %3 = vector.load %arg3[%c0_3, %c0_4] : memref<1x64xf32, #tpu.memory_space<vmem>>, vector<1x64xf32>
    %4 = vector.broadcast %3 : vector<1x64xf32> to vector<128x64xf32>
    %5 = arith.addf %2, %4 : vector<128x64xf32>
    %cst_5 = arith.constant 0.000000e+00 : f32
    %6 = vector.broadcast %cst_5 : f32 to vector<128x64xf32>
    %7 = arith.maximumf %5, %6 : vector<128x64xf32>
    %c0_6 = arith.constant 0 : index
    %c0_7 = arith.constant 0 : index
    %8 = vector.load %arg4[%c0_6, %c0_7] : memref<64x64xf32, #tpu.memory_space<vmem>>, vector<64x64xf32>
    %cst_8 = arith.constant dense<0.000000e+00> : vector<128x64xf32>
    %9 = tpu.matmul %7, %8, %cst_8 {dimension_numbers = #tpu.dot_dimension_numbers<[1], [0], [0], [1], [0, 0, 1, 1], [], []>} : vector<128x64xf32>, vector<64x64xf32>, vector<128x64xf32> -> vector<128x64xf32>
    %c0_9 = arith.constant 0 : index
    %c0_10 = arith.constant 0 : index
    %10 = vector.load %arg5[%c0_9, %c0_10] : memref<1x64xf32, #tpu.memory_space<vmem>>, vector<1x64xf32>
    %11 = vector.broadcast %10 : vector<1x64xf32> to vector<128x64xf32>
    %12 = arith.addf %9, %11 : vector<128x64xf32>
    %13 = math.tanh %12 : vector<128x64xf32>
    %c0_11 = arith.constant 0 : index
    %c0_12 = arith.constant 0 : index
    %14 = vector.load %arg6[%c0_11, %c0_12] : memref<64x64xf32, #tpu.memory_space<vmem>>, vector<64x64xf32>
    %cst_13 = arith.constant dense<0.000000e+00> : vector<128x64xf32>
    %15 = tpu.matmul %13, %14, %cst_13 {dimension_numbers = #tpu.dot_dimension_numbers<[1], [0], [0], [1], [0, 0, 1, 1], [], []>} : vector<128x64xf32>, vector<64x64xf32>, vector<128x64xf32> -> vector<128x64xf32>
    %c0_14 = arith.constant 0 : index
    %c0_15 = arith.constant 0 : index
    %16 = vector.load %arg7[%c0_14, %c0_15] : memref<1x64xf32, #tpu.memory_space<vmem>>, vector<1x64xf32>
    %17 = vector.broadcast %16 : vector<1x64xf32> to vector<128x64xf32>
    %18 = arith.addf %15, %17 : vector<128x64xf32>
    %c0_16 = arith.constant 0 : index
    %c0_17 = arith.constant 0 : index
    %19 = vector.load %arg8[%c0_16, %c0_17] : memref<64x128xf32, #tpu.memory_space<vmem>>, vector<64x128xf32>
    %cst_18 = arith.constant dense<0.000000e+00> : vector<128x128xf32>
    %20 = tpu.matmul %18, %19, %cst_18 {dimension_numbers = #tpu.dot_dimension_numbers<[1], [0], [0], [1], [0, 0, 1, 1], [], []>} : vector<128x64xf32>, vector<64x128xf32>, vector<128x128xf32> -> vector<128x128xf32>
    %c0_19 = arith.constant 0 : index
    %c0_20 = arith.constant 0 : index
    %21 = vector.load %arg9[%c0_19, %c0_20] : memref<1x128xf32, #tpu.memory_space<vmem>>, vector<1x128xf32>
    %22 = vector.broadcast %21 : vector<1x128xf32> to vector<128x128xf32>
    %23 = arith.addf %20, %22 : vector<128x128xf32>
    %cst_21 = arith.constant 0.000000e+00 : f32
    %24 = vector.broadcast %cst_21 : f32 to vector<128x128xf32>
    %25 = arith.maximumf %23, %24 : vector<128x128xf32>
    %c0_22 = arith.constant 0 : index
    %c0_23 = arith.constant 0 : index
    %26 = vector.load %arg10[%c0_22, %c0_23] : memref<128x128xf32, #tpu.memory_space<vmem>>, vector<128x128xf32>
    %cst_24 = arith.constant dense<0.000000e+00> : vector<128x128xf32>
    %27 = tpu.matmul %25, %26, %cst_24 {dimension_numbers = #tpu.dot_dimension_numbers<[1], [0], [0], [1], [0, 0, 1, 1], [], []>} : vector<128x128xf32>, vector<128x128xf32>, vector<128x128xf32> -> vector<128x128xf32>
    %c0_25 = arith.constant 0 : index
    %c0_26 = arith.constant 0 : index
    %28 = vector.load %arg11[%c0_25, %c0_26] : memref<1x128xf32, #tpu.memory_space<vmem>>, vector<1x128xf32>
    %29 = vector.broadcast %28 : vector<1x128xf32> to vector<128x128xf32>
    %30 = arith.addf %27, %29 : vector<128x128xf32>
    %31 = math.tanh %30 : vector<128x128xf32>
    %c0_27 = arith.constant 0 : index
    %c0_28 = arith.constant 0 : index
    %32 = vector.load %arg12[%c0_27, %c0_28] : memref<128x128xf32, #tpu.memory_space<vmem>>, vector<128x128xf32>
    %cst_29 = arith.constant dense<0.000000e+00> : vector<128x128xf32>
    %33 = tpu.matmul %31, %32, %cst_29 {dimension_numbers = #tpu.dot_dimension_numbers<[1], [0], [0], [1], [0, 0, 1, 1], [], []>} : vector<128x128xf32>, vector<128x128xf32>, vector<128x128xf32> -> vector<128x128xf32>
    %c0_30 = arith.constant 0 : index
    %c0_31 = arith.constant 0 : index
    %34 = vector.load %arg13[%c0_30, %c0_31] : memref<1x128xf32, #tpu.memory_space<vmem>>, vector<1x128xf32>
    %35 = vector.broadcast %34 : vector<1x128xf32> to vector<128x128xf32>
    %36 = arith.addf %33, %35 : vector<128x128xf32>
    %c0_32 = arith.constant 0 : index
    %c0_33 = arith.constant 0 : index
    %37 = vector.load %arg14[%c0_32, %c0_33] : memref<128x64xf32, #tpu.memory_space<vmem>>, vector<128x64xf32>
    %cst_34 = arith.constant dense<0.000000e+00> : vector<128x64xf32>
    %38 = tpu.matmul %36, %37, %cst_34 {dimension_numbers = #tpu.dot_dimension_numbers<[1], [0], [0], [1], [0, 0, 1, 1], [], []>} : vector<128x128xf32>, vector<128x64xf32>, vector<128x64xf32> -> vector<128x64xf32>
    %c0_35 = arith.constant 0 : index
    %c0_36 = arith.constant 0 : index
    %39 = vector.load %arg15[%c0_35, %c0_36] : memref<1x64xf32, #tpu.memory_space<vmem>>, vector<1x64xf32>
    %40 = vector.broadcast %39 : vector<1x64xf32> to vector<128x64xf32>
    %41 = arith.addf %38, %40 : vector<128x64xf32>
    %cst_37 = arith.constant 0.000000e+00 : f32
    %42 = vector.broadcast %cst_37 : f32 to vector<128x64xf32>
    %43 = arith.maximumf %41, %42 : vector<128x64xf32>
    %c0_38 = arith.constant 0 : index
    %c0_39 = arith.constant 0 : index
    %44 = vector.load %arg16[%c0_38, %c0_39] : memref<64x64xf32, #tpu.memory_space<vmem>>, vector<64x64xf32>
    %cst_40 = arith.constant dense<0.000000e+00> : vector<128x64xf32>
    %45 = tpu.matmul %43, %44, %cst_40 {dimension_numbers = #tpu.dot_dimension_numbers<[1], [0], [0], [1], [0, 0, 1, 1], [], []>} : vector<128x64xf32>, vector<64x64xf32>, vector<128x64xf32> -> vector<128x64xf32>
    %c0_41 = arith.constant 0 : index
    %c0_42 = arith.constant 0 : index
    %46 = vector.load %arg17[%c0_41, %c0_42] : memref<1x64xf32, #tpu.memory_space<vmem>>, vector<1x64xf32>
    %47 = vector.broadcast %46 : vector<1x64xf32> to vector<128x64xf32>
    %48 = arith.addf %45, %47 : vector<128x64xf32>
    %49 = math.tanh %48 : vector<128x64xf32>
    %c0_43 = arith.constant 0 : index
    %c0_44 = arith.constant 0 : index
    %50 = vector.load %arg18[%c0_43, %c0_44] : memref<64x64xf32, #tpu.memory_space<vmem>>, vector<64x64xf32>
    %cst_45 = arith.constant dense<0.000000e+00> : vector<128x64xf32>
    %51 = tpu.matmul %49, %50, %cst_45 {dimension_numbers = #tpu.dot_dimension_numbers<[1], [0], [0], [1], [0, 0, 1, 1], [], []>} : vector<128x64xf32>, vector<64x64xf32>, vector<128x64xf32> -> vector<128x64xf32>
    %c0_46 = arith.constant 0 : index
    %c0_47 = arith.constant 0 : index
    %52 = vector.load %arg19[%c0_46, %c0_47] : memref<1x64xf32, #tpu.memory_space<vmem>>, vector<1x64xf32>
    %53 = vector.broadcast %52 : vector<1x64xf32> to vector<128x64xf32>
    %54 = arith.addf %51, %53 : vector<128x64xf32>
    %c0_48 = arith.constant 0 : index
    %c0_49 = arith.constant 0 : index
    %55 = vector.load %arg20[%c0_48, %c0_49] : memref<64x128xf32, #tpu.memory_space<vmem>>, vector<64x128xf32>
    %cst_50 = arith.constant dense<0.000000e+00> : vector<128x128xf32>
    %56 = tpu.matmul %54, %55, %cst_50 {dimension_numbers = #tpu.dot_dimension_numbers<[1], [0], [0], [1], [0, 0, 1, 1], [], []>} : vector<128x64xf32>, vector<64x128xf32>, vector<128x128xf32> -> vector<128x128xf32>
    %c0_51 = arith.constant 0 : index
    %c0_52 = arith.constant 0 : index
    %57 = vector.load %arg21[%c0_51, %c0_52] : memref<1x128xf32, #tpu.memory_space<vmem>>, vector<1x128xf32>
    %58 = vector.broadcast %57 : vector<1x128xf32> to vector<128x128xf32>
    %59 = arith.addf %56, %58 : vector<128x128xf32>
    %c0_53 = arith.constant 0 : index
    %c0_54 = arith.constant 0 : index
    %60 = vector.load %arg22[%c0_53, %c0_54] : memref<128x128xf32, #tpu.memory_space<vmem>>, vector<128x128xf32>
    tpu.vector_store %arg22[%c0_53, %c0_54], %59 {strides = array<i32>} : memref<128x128xf32, #tpu.memory_space<vmem>>, vector<128x128xf32>,
    return
  }
  func.func @transform_0(%arg0: i32) -> (i32, i32) {
    %c0_i32 = arith.constant 0 : i32
    %c0_i32_0 = arith.constant 0 : i32
    return %arg0, %c0_i32 : i32, i32
  }
  func.func @transform_1(%arg0: i32) -> (i32, i32) {
    %c0_i32 = arith.constant 0 : i32
    %c0_i32_0 = arith.constant 0 : i32
    %c0_i32_1 = arith.constant 0 : i32
    return %c0_i32, %c0_i32_0 : i32, i32
  }
  func.func @transform_2(%arg0: i32) -> (i32, i32) {
    %c0_i32 = arith.constant 0 : i32
    %c0_i32_0 = arith.constant 0 : i32
    %c0_i32_1 = arith.constant 0 : i32
    return %c0_i32, %c0_i32_0 : i32, i32
  }
  func.func @transform_3(%arg0: i32) -> (i32, i32) {
    %c0_i32 = arith.constant 0 : i32
    %c0_i32_0 = arith.constant 0 : i32
    %c0_i32_1 = arith.constant 0 : i32
    return %c0_i32, %c0_i32_0 : i32, i32
  }
  func.func @transform_4(%arg0: i32) -> (i32, i32) {
    %c0_i32 = arith.constant 0 : i32
    %c0_i32_0 = arith.constant 0 : i32
    %c0_i32_1 = arith.constant 0 : i32
    return %c0_i32, %c0_i32_0 : i32, i32
  }
  func.func @transform_5(%arg0: i32) -> (i32, i32) {
    %c0_i32 = arith.constant 0 : i32
    %c0_i32_0 = arith.constant 0 : i32
    %c0_i32_1 = arith.constant 0 : i32
    return %c0_i32, %c0_i32_0 : i32, i32
  }
  func.func @transform_6(%arg0: i32) -> (i32, i32) {
    %c0_i32 = arith.constant 0 : i32
    %c0_i32_0 = arith.constant 0 : i32
    %c0_i32_1 = arith.constant 0 : i32
    return %c0_i32, %c0_i32_0 : i32, i32
  }
  func.func @transform_7(%arg0: i32) -> (i32, i32) {
    %c0_i32 = arith.constant 0 : i32
    %c0_i32_0 = arith.constant 0 : i32
    %c0_i32_1 = arith.constant 0 : i32
    return %c0_i32, %c0_i32_0 : i32, i32
  }
  func.func @transform_8(%arg0: i32) -> (i32, i32) {
    %c0_i32 = arith.constant 0 : i32
    %c0_i32_0 = arith.constant 0 : i32
    %c0_i32_1 = arith.constant 0 : i32
    return %c0_i32, %c0_i32_0 : i32, i32
  }
  func.func @transform_9(%arg0: i32) -> (i32, i32) {
    %c0_i32 = arith.constant 0 : i32
    %c0_i32_0 = arith.constant 0 : i32
    %c0_i32_1 = arith.constant 0 : i32
    return %c0_i32, %c0_i32_0 : i32, i32
  }
  func.func @transform_10(%arg0: i32) -> (i32, i32) {
    %c0_i32 = arith.constant 0 : i32
    %c0_i32_0 = arith.constant 0 : i32
    %c0_i32_1 = arith.constant 0 : i32
    return %c0_i32, %c0_i32_0 : i32, i32
  }
  func.func @transform_11(%arg0: i32) -> (i32, i32) {
    %c0_i32 = arith.constant 0 : i32
    %c0_i32_0 = arith.constant 0 : i32
    %c0_i32_1 = arith.constant 0 : i32
    return %c0_i32, %c0_i32_0 : i32, i32
  }
  func.func @transform_12(%arg0: i32) -> (i32, i32) {
    %c0_i32 = arith.constant 0 : i32
    %c0_i32_0 = arith.constant 0 : i32
    %c0_i32_1 = arith.constant 0 : i32
    return %c0_i32, %c0_i32_0 : i32, i32
  }
  func.func @transform_13(%arg0: i32) -> (i32, i32) {
    %c0_i32 = arith.constant 0 : i32
    %c0_i32_0 = arith.constant 0 : i32
    %c0_i32_1 = arith.constant 0 : i32
    return %c0_i32, %c0_i32_0 : i32, i32
  }
  func.func @transform_14(%arg0: i32) -> (i32, i32) {
    %c0_i32 = arith.constant 0 : i32
    %c0_i32_0 = arith.constant 0 : i32
    %c0_i32_1 = arith.constant 0 : i32
    return %c0_i32, %c0_i32_0 : i32, i32
  }
  func.func @transform_15(%arg0: i32) -> (i32, i32) {
    %c0_i32 = arith.constant 0 : i32
    %c0_i32_0 = arith.constant 0 : i32
    %c0_i32_1 = arith.constant 0 : i32
    return %c0_i32, %c0_i32_0 : i32, i32
  }
  func.func @transform_16(%arg0: i32) -> (i32, i32) {
    %c0_i32 = arith.constant 0 : i32
    %c0_i32_0 = arith.constant 0 : i32
    %c0_i32_1 = arith.constant 0 : i32
    return %c0_i32, %c0_i32_0 : i32, i32
  }
  func.func @transform_17(%arg0: i32) -> (i32, i32) {
    %c0_i32 = arith.constant 0 : i32
    %c0_i32_0 = arith.constant 0 : i32
    %c0_i32_1 = arith.constant 0 : i32
    return %c0_i32, %c0_i32_0 : i32, i32
  }
  func.func @transform_18(%arg0: i32) -> (i32, i32) {
    %c0_i32 = arith.constant 0 : i32
    %c0_i32_0 = arith.constant 0 : i32
    %c0_i32_1 = arith.constant 0 : i32
    return %c0_i32, %c0_i32_0 : i32, i32
  }
  func.func @transform_19(%arg0: i32) -> (i32, i32) {
    %c0_i32 = arith.constant 0 : i32
    %c0_i32_0 = arith.constant 0 : i32
    %c0_i32_1 = arith.constant 0 : i32
    return %c0_i32, %c0_i32_0 : i32, i32
  }
  func.func @transform_20(%arg0: i32) -> (i32, i32) {
    %c0_i32 = arith.constant 0 : i32
    %c0_i32_0 = arith.constant 0 : i32
    %c0_i32_1 = arith.constant 0 : i32
    return %c0_i32, %c0_i32_0 : i32, i32
  }
  func.func @transform_21(%arg0: i32) -> (i32, i32) {
    %c0_i32 = arith.constant 0 : i32
    %c0_i32_0 = arith.constant 0 : i32
    return %arg0, %c0_i32 : i32, i32
  }
}

</mosaic_0001>

<llo_original>
// kernel: forward.1
$region0: #{forward.1}
  #allocation0 [shape = 'u32[]', space=smem, size = 0x4, offset = 0x4, fixed_abs, tag = 'smem constant byte address 0x4 - core index']
  #allocation1 [shape = 'u32[144,128]{1,0:T(1,128)}', space=vmem, size = 0x12000, scoped, tag = 'internal scratch']
  %s0 = inlined_call_operand.vmem [shape: f32[256,8], index: 0, kind: input, shape index: {}]
  %s1 = inlined_call_operand.vmem [shape: f32[8,64], index: 1, kind: input, shape index: {}]
  %s2 = inlined_call_operand.vmem [shape: f32[1,64], index: 2, kind: input, shape index: {}]
  %s3 = inlined_call_operand.vmem [shape: f32[64,64], index: 3, kind: input, shape index: {}]
  %s4 = inlined_call_operand.vmem [shape: f32[1,64], index: 4, kind: input, shape index: {}]
  %s5 = inlined_call_operand.vmem [shape: f32[64,64], index: 5, kind: input, shape index: {}]
  %s6 = inlined_call_operand.vmem [shape: f32[1,64], index: 6, kind: input, shape index: {}]
  %s7 = inlined_call_operand.vmem [shape: f32[64,128], index: 7, kind: input, shape index: {}]
  %s8 = inlined_call_operand.vmem [shape: f32[1,128], index: 8, kind: input, shape index: {}]
  %s9 = inlined_call_operand.vmem [shape: f32[128,128], index: 9, kind: input, shape index: {}]
  %s10 = inlined_call_operand.vmem [shape: f32[1,128], index: 10, kind: input, shape index: {}]
  %s11 = inlined_call_operand.vmem [shape: f32[128,128], index: 11, kind: input, shape index: {}]
  %s12 = inlined_call_operand.vmem [shape: f32[1,128], index: 12, kind: input, shape index: {}]
  %s13 = inlined_call_operand.vmem [shape: f32[128,64], index: 13, kind: input, shape index: {}]
  %s14 = inlined_call_operand.vmem [shape: f32[1,64], index: 14, kind: input, shape index: {}]
  %s15 = inlined_call_operand.vmem [shape: f32[64,64], index: 15, kind: input, shape index: {}]
  %s16 = inlined_call_operand.vmem [shape: f32[1,64], index: 16, kind: input, shape index: {}]
  %s17 = inlined_call_operand.vmem [shape: f32[64,64], index: 17, kind: input, shape index: {}]
  %s18 = inlined_call_operand.vmem [shape: f32[1,64], index: 18, kind: input, shape index: {}]
  %s19 = inlined_call_operand.vmem [shape: f32[64,128], index: 19, kind: input, shape index: {}]
  %s20 = inlined_call_operand.vmem [shape: f32[1,128], index: 20, kind: input, shape index: {}]
  %s21 = inlined_call_operand.vmem [shape: f32[256,128], index: 21, kind: output, shape index: {}]
  %s22 = sld [smem:[#allocation0]]
  $region117: #{forward.1} parent=0
    _
  %s24 = ssub.s32 1, %s22
  %s25 = scalar_select 0, %s24, %s22
  loop: start=0, step=1, limit=4
  $region2: #{forward.1} parent=0 // loop_pre_header
    _
  $region3: #{forward.1} parent=0 // loop_header
    %s27 = sphi 0, %s31
    %p28 = scmp.ge.s32.totalorder %s27, 4
    %s37 = sphi 0, %s39
    %s40 = sphi 0, %s37
    %s41 = sphi 0, %s40
    %s57 = sphi 0, %s41
    %s61 = sphi 0, %s61
    %s63 = sphi 0, %s61
    %s64 = sphi 0, %s63
    %s78 = sphi 0, %s64
    %s82 = sphi 0, %s82
    %s84 = sphi 0, %s82
    %s85 = sphi 0, %s84
    %s99 = sphi 0, %s85
    %s103 = sphi 0, %s103
    %s105 = sphi 0, %s103
    %s106 = sphi 0, %s105
    %s120 = sphi 0, %s106
    %s124 = sphi 0, %s124
    %s126 = sphi 0, %s124
    %s127 = sphi 0, %s126
    %s141 = sphi 0, %s127
    %s145 = sphi 0, %s145
    %s147 = sphi 0, %s145
    %s148 = sphi 0, %s147
    %s162 = sphi 0, %s148
    %s166 = sphi 0, %s166
    %s168 = sphi 0, %s166
    %s169 = sphi 0, %s168
    %s183 = sphi 0, %s169
    %s187 = sphi 0, %s187
    %s189 = sphi 0, %s187
    %s190 = sphi 0, %s189
    %s204 = sphi 0, %s190
    %s208 = sphi 0, %s208
    %s210 = sphi 0, %s208
    %s211 = sphi 0, %s210
    %s225 = sphi 0, %s211
    %s229 = sphi 0, %s229
    %s231 = sphi 0, %s229
    %s232 = sphi 0, %s231
    %s246 = sphi 0, %s232
    %s250 = sphi 0, %s250
    %s252 = sphi 0, %s250
    %s253 = sphi 0, %s252
    %s267 = sphi 0, %s253
    %s271 = sphi 0, %s271
    %s273 = sphi 0, %s271
    %s274 = sphi 0, %s273
    %s288 = sphi 0, %s274
    %s292 = sphi 0, %s292
    %s294 = sphi 0, %s292
    %s295 = sphi 0, %s294
    %s309 = sphi 0, %s295
    %s313 = sphi 0, %s313
    %s315 = sphi 0, %s313
    %s316 = sphi 0, %s315
    %s330 = sphi 0, %s316
    %s334 = sphi 0, %s334
    %s336 = sphi 0, %s334
    %s337 = sphi 0, %s336
    %s351 = sphi 0, %s337
    %s355 = sphi 0, %s355
    %s357 = sphi 0, %s355
    %s358 = sphi 0, %s357
    %s372 = sphi 0, %s358
    %s376 = sphi 0, %s376
    %s378 = sphi 0, %s376
    %s379 = sphi 0, %s378
    %s393 = sphi 0, %s379
    %s397 = sphi 0, %s397
    %s399 = sphi 0, %s397
    %s400 = sphi 0, %s399
    %s414 = sphi 0, %s400
    %s418 = sphi 0, %s418
    %s420 = sphi 0, %s418
    %s421 = sphi 0, %s420
    %s435 = sphi 0, %s421
    %s439 = sphi 0, %s439
    %s441 = sphi 0, %s439
    %s442 = sphi 0, %s441
    %s456 = sphi 0, %s442
    %s460 = sphi 0, %s460
    %s462 = sphi 0, %s460
    %s463 = sphi 0, %s462
    %s477 = sphi 0, %s463
    %s483 = sphi 0, %s485
    %s486 = sphi 0, %s483
    %s487 = sphi 0, %s486
    %s503 = sphi 0, %s487
  $region4: #{forward.1} parent=0 // loop_header_branch
    %30 = sbr.rel (%p28) target = $region8
  $region5: #{forward.1} parent=0 // loop_body
    %s32 = ssub.s32 %s27, 1
    %s33 = ssub.s32 %s27, 2
    %s34 = sadd.s32 %s27, 1
    %s35 = ssub.s32 %s27, %s34
    %p36 = scmp.eq.s32.totalorder %s35, 0
    %s38 = sadd.s32 %s37, 1
    %s39 = scalar_select %p36, %s37, %s38
    %p42 = pneg %p36
    %p43 = scmp.eq.s32.totalorder %s27, 1
    %p44 = por %p42, %p43
    %p45 = scmp.ne.s32.totalorder %s37, %s40
    %p46 = scmp.eq.s32.totalorder %s27, 0
    %p47 = por %p45, %p46
    %p48 = scmp.ne.s32.totalorder %s37, %s40
    %p49 = scmp.eq.s32.totalorder %s32, 1
    %p50 = por %p48, %p49
    %p51 = scmp.ne.s32.totalorder %s40, %s41
    %p52 = scmp.eq.s32.totalorder %s32, 0
    %p53 = por %p51, %p52
    %p54 = scmp.ne.s32.totalorder %s40, %s41
    %p55 = scmp.eq.s32.totalorder %s33, 1
    %p56 = por %p54, %p55
    %p58 = scmp.ne.s32.totalorder %s41, %s57
    %p59 = scmp.eq.s32.totalorder %s33, 0
    %p60 = por %p58, %p59
    %s62 = sadd.s32 %s61, 1
    %p65 = scmp.eq.s32.totalorder %s27, 1
    %p66 = scmp.ne.s32.totalorder %s61, %s63
    %p67 = scmp.eq.s32.totalorder %s27, 0
    %p68 = por %p66, %p67
    %p69 = scmp.ne.s32.totalorder %s61, %s63
    %p70 = scmp.eq.s32.totalorder %s32, 1
    %p71 = por %p69, %p70
    %p72 = scmp.ne.s32.totalorder %s63, %s64
    %p73 = scmp.eq.s32.totalorder %s32, 0
    %p74 = por %p72, %p73
    %p75 = scmp.ne.s32.totalorder %s63, %s64
    %p76 = scmp.eq.s32.totalorder %s33, 1
    %p77 = por %p75, %p76
    %p79 = scmp.ne.s32.totalorder %s64, %s78
    %p80 = scmp.eq.s32.totalorder %s33, 0
    %p81 = por %p79, %p80
    %s83 = sadd.s32 %s82, 1
    %p86 = scmp.eq.s32.totalorder %s27, 1
    %p87 = scmp.ne.s32.totalorder %s82, %s84
    %p88 = scmp.eq.s32.totalorder %s27, 0
    %p89 = por %p87, %p88
    %p90 = scmp.ne.s32.totalorder %s82, %s84
    %p91 = scmp.eq.s32.totalorder %s32, 1
    %p92 = por %p90, %p91
    %p93 = scmp.ne.s32.totalorder %s84, %s85
    %p94 = scmp.eq.s32.totalorder %s32, 0
    %p95 = por %p93, %p94
    %p96 = scmp.ne.s32.totalorder %s84, %s85
    %p97 = scmp.eq.s32.totalorder %s33, 1
    %p98 = por %p96, %p97
    %p100 = scmp.ne.s32.totalorder %s85, %s99
    %p101 = scmp.eq.s32.totalorder %s33, 0
    %p102 = por %p100, %p101
    %s104 = sadd.s32 %s103, 1
    %p107 = scmp.eq.s32.totalorder %s27, 1
    %p108 = scmp.ne.s32.totalorder %s103, %s105
    %p109 = scmp.eq.s32.totalorder %s27, 0
    %p110 = por %p108, %p109
    %p111 = scmp.ne.s32.totalorder %s103, %s105
    %p112 = scmp.eq.s32.totalorder %s32, 1
    %p113 = por %p111, %p112
    %p114 = scmp.ne.s32.totalorder %s105, %s106
    %p115 = scmp.eq.s32.totalorder %s32, 0
    %p116 = por %p114, %p115
    %p117 = scmp.ne.s32.totalorder %s105, %s106
    %p118 = scmp.eq.s32.totalorder %s33, 1
    %p119 = por %p117, %p118
    %p121 = scmp.ne.s32.totalorder %s106, %s120
    %p122 = scmp.eq.s32.totalorder %s33, 0
    %p123 = por %p121, %p122
    %s125 = sadd.s32 %s124, 1
    %p128 = scmp.eq.s32.totalorder %s27, 1
    %p129 = scmp.ne.s32.totalorder %s124, %s126
    %p130 = scmp.eq.s32.totalorder %s27, 0
    %p131 = por %p129, %p130
    %p132 = scmp.ne.s32.totalorder %s124, %s126
    %p133 = scmp.eq.s32.totalorder %s32, 1
    %p134 = por %p132, %p133
    %p135 = scmp.ne.s32.totalorder %s126, %s127
    %p136 = scmp.eq.s32.totalorder %s32, 0
    %p137 = por %p135, %p136
    %p138 = scmp.ne.s32.totalorder %s126, %s127
    %p139 = scmp.eq.s32.totalorder %s33, 1
    %p140 = por %p138, %p139
    %p142 = scmp.ne.s32.totalorder %s127, %s141
    %p143 = scmp.eq.s32.totalorder %s33, 0
    %p144 = por %p142, %p143
    %s146 = sadd.s32 %s145, 1
    %p149 = scmp.eq.s32.totalorder %s27, 1
    %p150 = scmp.ne.s32.totalorder %s145, %s147
    %p151 = scmp.eq.s32.totalorder %s27, 0
    %p152 = por %p150, %p151
    %p153 = scmp.ne.s32.totalorder %s145, %s147
    %p154 = scmp.eq.s32.totalorder %s32, 1
    %p155 = por %p153, %p154
    %p156 = scmp.ne.s32.totalorder %s147, %s148
    %p157 = scmp.eq.s32.totalorder %s32, 0
    %p158 = por %p156, %p157
    %p159 = scmp.ne.s32.totalorder %s147, %s148
    %p160 = scmp.eq.s32.totalorder %s33, 1
    %p161 = por %p159, %p160
    %p163 = scmp.ne.s32.totalorder %s148, %s162
    %p164 = scmp.eq.s32.totalorder %s33, 0
    %p165 = por %p163, %p164
    %s167 = sadd.s32 %s166, 1
    %p170 = scmp.eq.s32.totalorder %s27, 1
    %p171 = scmp.ne.s32.totalorder %s166, %s168
    %p172 = scmp.eq.s32.totalorder %s27, 0
    %p173 = por %p171, %p172
    %p174 = scmp.ne.s32.totalorder %s166, %s168
    %p175 = scmp.eq.s32.totalorder %s32, 1
    %p176 = por %p174, %p175
    %p177 = scmp.ne.s32.totalorder %s168, %s169
    %p178 = scmp.eq.s32.totalorder %s32, 0
    %p179 = por %p177, %p178
    %p180 = scmp.ne.s32.totalorder %s168, %s169
    %p181 = scmp.eq.s32.totalorder %s33, 1
    %p182 = por %p180, %p181
    %p184 = scmp.ne.s32.totalorder %s169, %s183
    %p185 = scmp.eq.s32.totalorder %s33, 0
    %p186 = por %p184, %p185
    %s188 = sadd.s32 %s187, 1
    %p191 = scmp.eq.s32.totalorder %s27, 1
    %p192 = scmp.ne.s32.totalorder %s187, %s189
    %p193 = scmp.eq.s32.totalorder %s27, 0
    %p194 = por %p192, %p193
    %p195 = scmp.ne.s32.totalorder %s187, %s189
    %p196 = scmp.eq.s32.totalorder %s32, 1
    %p197 = por %p195, %p196
    %p198 = scmp.ne.s32.totalorder %s189, %s190
    %p199 = scmp.eq.s32.totalorder %s32, 0
    %p200 = por %p198, %p199
    %p201 = scmp.ne.s32.totalorder %s189, %s190
    %p202 = scmp.eq.s32.totalorder %s33, 1
    %p203 = por %p201, %p202
    %p205 = scmp.ne.s32.totalorder %s190, %s204
    %p206 = scmp.eq.s32.totalorder %s33, 0
    %p207 = por %p205, %p206
    %s209 = sadd.s32 %s208, 1
    %p212 = scmp.eq.s32.totalorder %s27, 1
    %p213 = scmp.ne.s32.totalorder %s208, %s210
    %p214 = scmp.eq.s32.totalorder %s27, 0
    %p215 = por %p213, %p214
    %p216 = scmp.ne.s32.totalorder %s208, %s210
    %p217 = scmp.eq.s32.totalorder %s32, 1
    %p218 = por %p216, %p217
    %p219 = scmp.ne.s32.totalorder %s210, %s211
    %p220 = scmp.eq.s32.totalorder %s32, 0
    %p221 = por %p219, %p220
    %p222 = scmp.ne.s32.totalorder %s210, %s211
    %p223 = scmp.eq.s32.totalorder %s33, 1
    %p224 = por %p222, %p223
    %p226 = scmp.ne.s32.totalorder %s211, %s225
    %p227 = scmp.eq.s32.totalorder %s33, 0
    %p228 = por %p226, %p227
    %s230 = sadd.s32 %s229, 1
    %p233 = scmp.eq.s32.totalorder %s27, 1
    %p234 = scmp.ne.s32.totalorder %s229, %s231
    %p235 = scmp.eq.s32.totalorder %s27, 0
    %p236 = por %p234, %p235
    %p237 = scmp.ne.s32.totalorder %s229, %s231
    %p238 = scmp.eq.s32.totalorder %s32, 1
    %p239 = por %p237, %p238
    %p240 = scmp.ne.s32.totalorder %s231, %s232
    %p241 = scmp.eq.s32.totalorder %s32, 0
    %p242 = por %p240, %p241
    %p243 = scmp.ne.s32.totalorder %s231, %s232
    %p244 = scmp.eq.s32.totalorder %s33, 1
    %p245 = por %p243, %p244
    %p247 = scmp.ne.s32.totalorder %s232, %s246
    %p248 = scmp.eq.s32.totalorder %s33, 0
    %p249 = por %p247, %p248
    %s251 = sadd.s32 %s250, 1
    %p254 = scmp.eq.s32.totalorder %s27, 1
    %p255 = scmp.ne.s32.totalorder %s250, %s252
    %p256 = scmp.eq.s32.totalorder %s27, 0
    %p257 = por %p255, %p256
    %p258 = scmp.ne.s32.totalorder %s250, %s252
    %p259 = scmp.eq.s32.totalorder %s32, 1
    %p260 = por %p258, %p259
    %p261 = scmp.ne.s32.totalorder %s252, %s253
    %p262 = scmp.eq.s32.totalorder %s32, 0
    %p263 = por %p261, %p262
    %p264 = scmp.ne.s32.totalorder %s252, %s253
    %p265 = scmp.eq.s32.totalorder %s33, 1
    %p266 = por %p264, %p265
    %p268 = scmp.ne.s32.totalorder %s253, %s267
    %p269 = scmp.eq.s32.totalorder %s33, 0
    %p270 = por %p268, %p269
    %s272 = sadd.s32 %s271, 1
    %p275 = scmp.eq.s32.totalorder %s27, 1
    %p276 = scmp.ne.s32.totalorder %s271, %s273
    %p277 = scmp.eq.s32.totalorder %s27, 0
    %p278 = por %p276, %p277
    %p279 = scmp.ne.s32.totalorder %s271, %s273
    %p280 = scmp.eq.s32.totalorder %s32, 1
    %p281 = por %p279, %p280
    %p282 = scmp.ne.s32.totalorder %s273, %s274
    %p283 = scmp.eq.s32.totalorder %s32, 0
    %p284 = por %p282, %p283
    %p285 = scmp.ne.s32.totalorder %s273, %s274
    %p286 = scmp.eq.s32.totalorder %s33, 1
    %p287 = por %p285, %p286
    %p289 = scmp.ne.s32.totalorder %s274, %s288
    %p290 = scmp.eq.s32.totalorder %s33, 0
    %p291 = por %p289, %p290
    %s293 = sadd.s32 %s292, 1
    %p296 = scmp.eq.s32.totalorder %s27, 1
    %p297 = scmp.ne.s32.totalorder %s292, %s294
    %p298 = scmp.eq.s32.totalorder %s27, 0
    %p299 = por %p297, %p298
    %p300 = scmp.ne.s32.totalorder %s292, %s294
    %p301 = scmp.eq.s32.totalorder %s32, 1
    %p302 = por %p300, %p301
    %p303 = scmp.ne.s32.totalorder %s294, %s295
    %p304 = scmp.eq.s32.totalorder %s32, 0
    %p305 = por %p303, %p304
    %p306 = scmp.ne.s32.totalorder %s294, %s295
    %p307 = scmp.eq.s32.totalorder %s33, 1
    %p308 = por %p306, %p307
    %p310 = scmp.ne.s32.totalorder %s295, %s309
    %p311 = scmp.eq.s32.totalorder %s33, 0
    %p312 = por %p310, %p311
    %s314 = sadd.s32 %s313, 1
    %p317 = scmp.eq.s32.totalorder %s27, 1
    %p318 = scmp.ne.s32.totalorder %s313, %s315
    %p319 = scmp.eq.s32.totalorder %s27, 0
    %p320 = por %p318, %p319
    %p321 = scmp.ne.s32.totalorder %s313, %s315
    %p322 = scmp.eq.s32.totalorder %s32, 1
    %p323 = por %p321, %p322
    %p324 = scmp.ne.s32.totalorder %s315, %s316
    %p325 = scmp.eq.s32.totalorder %s32, 0
    %p326 = por %p324, %p325
    %p327 = scmp.ne.s32.totalorder %s315, %s316
    %p328 = scmp.eq.s32.totalorder %s33, 1
    %p329 = por %p327, %p328
    %p331 = scmp.ne.s32.totalorder %s316, %s330
    %p332 = scmp.eq.s32.totalorder %s33, 0
    %p333 = por %p331, %p332
    %s335 = sadd.s32 %s334, 1
    %p338 = scmp.eq.s32.totalorder %s27, 1
    %p339 = scmp.ne.s32.totalorder %s334, %s336
    %p340 = scmp.eq.s32.totalorder %s27, 0
    %p341 = por %p339, %p340
    %p342 = scmp.ne.s32.totalorder %s334, %s336
    %p343 = scmp.eq.s32.totalorder %s32, 1
    %p344 = por %p342, %p343
    %p345 = scmp.ne.s32.totalorder %s336, %s337
    %p346 = scmp.eq.s32.totalorder %s32, 0
    %p347 = por %p345, %p346
    %p348 = scmp.ne.s32.totalorder %s336, %s337
    %p349 = scmp.eq.s32.totalorder %s33, 1
    %p350 = por %p348, %p349
    %p352 = scmp.ne.s32.totalorder %s337, %s351
    %p353 = scmp.eq.s32.totalorder %s33, 0
    %p354 = por %p352, %p353
    %s356 = sadd.s32 %s355, 1
    %p359 = scmp.eq.s32.totalorder %s27, 1
    %p360 = scmp.ne.s32.totalorder %s355, %s357
    %p361 = scmp.eq.s32.totalorder %s27, 0
    %p362 = por %p360, %p361
    %p363 = scmp.ne.s32.totalorder %s355, %s357
    %p364 = scmp.eq.s32.totalorder %s32, 1
    %p365 = por %p363, %p364
    %p366 = scmp.ne.s32.totalorder %s357, %s358
    %p367 = scmp.eq.s32.totalorder %s32, 0
    %p368 = por %p366, %p367
    %p369 = scmp.ne.s32.totalorder %s357, %s358
    %p370 = scmp.eq.s32.totalorder %s33, 1
    %p371 = por %p369, %p370
    %p373 = scmp.ne.s32.totalorder %s358, %s372
    %p374 = scmp.eq.s32.totalorder %s33, 0
    %p375 = por %p373, %p374
    %s377 = sadd.s32 %s376, 1
    %p380 = scmp.eq.s32.totalorder %s27, 1
    %p381 = scmp.ne.s32.totalorder %s376, %s378
    %p382 = scmp.eq.s32.totalorder %s27, 0
    %p383 = por %p381, %p382
    %p384 = scmp.ne.s32.totalorder %s376, %s378
    %p385 = scmp.eq.s32.totalorder %s32, 1
    %p386 = por %p384, %p385
    %p387 = scmp.ne.s32.totalorder %s378, %s379
    %p388 = scmp.eq.s32.totalorder %s32, 0
    %p389 = por %p387, %p388
    %p390 = scmp.ne.s32.totalorder %s378, %s379
    %p391 = scmp.eq.s32.totalorder %s33, 1
    %p392 = por %p390, %p391
    %p394 = scmp.ne.s32.totalorder %s379, %s393
    %p395 = scmp.eq.s32.totalorder %s33, 0
    %p396 = por %p394, %p395
    %s398 = sadd.s32 %s397, 1
    %p401 = scmp.eq.s32.totalorder %s27, 1
    %p402 = scmp.ne.s32.totalorder %s397, %s399
    %p403 = scmp.eq.s32.totalorder %s27, 0
    %p404 = por %p402, %p403
    %p405 = scmp.ne.s32.totalorder %s397, %s399
    %p406 = scmp.eq.s32.totalorder %s32, 1
    %p407 = por %p405, %p406
    %p408 = scmp.ne.s32.totalorder %s399, %s400
    %p409 = scmp.eq.s32.totalorder %s32, 0
    %p410 = por %p408, %p409
    %p411 = scmp.ne.s32.totalorder %s399, %s400
    %p412 = scmp.eq.s32.totalorder %s33, 1
    %p413 = por %p411, %p412
    %p415 = scmp.ne.s32.totalorder %s400, %s414
    %p416 = scmp.eq.s32.totalorder %s33, 0
    %p417 = por %p415, %p416
    %s419 = sadd.s32 %s418, 1
    %p422 = scmp.eq.s32.totalorder %s27, 1
    %p423 = scmp.ne.s32.totalorder %s418, %s420
    %p424 = scmp.eq.s32.totalorder %s27, 0
    %p425 = por %p423, %p424
    %p426 = scmp.ne.s32.totalorder %s418, %s420
    %p427 = scmp.eq.s32.totalorder %s32, 1
    %p428 = por %p426, %p427
    %p429 = scmp.ne.s32.totalorder %s420, %s421
    %p430 = scmp.eq.s32.totalorder %s32, 0
    %p431 = por %p429, %p430
    %p432 = scmp.ne.s32.totalorder %s420, %s421
    %p433 = scmp.eq.s32.totalorder %s33, 1
    %p434 = por %p432, %p433
    %p436 = scmp.ne.s32.totalorder %s421, %s435
    %p437 = scmp.eq.s32.totalorder %s33, 0
    %p438 = por %p436, %p437
    %s440 = sadd.s32 %s439, 1
    %p443 = scmp.eq.s32.totalorder %s27, 1
    %p444 = scmp.ne.s32.totalorder %s439, %s441
    %p445 = scmp.eq.s32.totalorder %s27, 0
    %p446 = por %p444, %p445
    %p447 = scmp.ne.s32.totalorder %s439, %s441
    %p448 = scmp.eq.s32.totalorder %s32, 1
    %p449 = por %p447, %p448
    %p450 = scmp.ne.s32.totalorder %s441, %s442
    %p451 = scmp.eq.s32.totalorder %s32, 0
    %p452 = por %p450, %p451
    %p453 = scmp.ne.s32.totalorder %s441, %s442
    %p454 = scmp.eq.s32.totalorder %s33, 1
    %p455 = por %p453, %p454
    %p457 = scmp.ne.s32.totalorder %s442, %s456
    %p458 = scmp.eq.s32.totalorder %s33, 0
    %p459 = por %p457, %p458
    %s461 = sadd.s32 %s460, 1
    %p464 = scmp.eq.s32.totalorder %s27, 1
    %p465 = scmp.ne.s32.totalorder %s460, %s462
    %p466 = scmp.eq.s32.totalorder %s27, 0
    %p467 = por %p465, %p466
    %p468 = scmp.ne.s32.totalorder %s460, %s462
    %p469 = scmp.eq.s32.totalorder %s32, 1
    %p470 = por %p468, %p469
    %p471 = scmp.ne.s32.totalorder %s462, %s463
    %p472 = scmp.eq.s32.totalorder %s32, 0
    %p473 = por %p471, %p472
    %p474 = scmp.ne.s32.totalorder %s462, %s463
    %p475 = scmp.eq.s32.totalorder %s33, 1
    %p476 = por %p474, %p475
    %p478 = scmp.ne.s32.totalorder %s463, %s477
    %p479 = scmp.eq.s32.totalorder %s33, 0
    %p480 = por %p478, %p479
    %s481 = ssub.s32 %s27, %s34
    %p482 = scmp.eq.s32.totalorder %s481, 0
    %s484 = sadd.s32 %s483, 1
    %s485 = scalar_select %p482, %s483, %s484
    %p488 = pneg %p482
    %p489 = scmp.eq.s32.totalorder %s27, 1
    %p490 = por %p488, %p489
    %p491 = scmp.ne.s32.totalorder %s483, %s486
    %p492 = scmp.eq.s32.totalorder %s27, 0
    %p493 = por %p491, %p492
    %p494 = scmp.ne.s32.totalorder %s483, %s486
    %p495 = scmp.eq.s32.totalorder %s32, 1
    %p496 = por %p494, %p495
    %p497 = scmp.ne.s32.totalorder %s486, %s487
    %p498 = scmp.eq.s32.totalorder %s32, 0
    %p499 = por %p497, %p498
    %p500 = scmp.ne.s32.totalorder %s486, %s487
    %p501 = scmp.eq.s32.totalorder %s33, 1
    %p502 = por %p500, %p501
    %p504 = scmp.ne.s32.totalorder %s487, %s503
    %p505 = scmp.eq.s32.totalorder %s33, 0
    %p506 = por %p504, %p505
    %p507 = scmp.le.s32.totalorder 1, %s27
    %p508 = scmp.lt.s32.totalorder %s27, 3
    %p509 = pnand %p507, %p508
    %p510 = pneg %p509
    // Predicated region
    $region9: #{forward.1} parent=5 // pred_check
      _
    $region10: #{forward.1} parent=5 // pred_check_branch
      %512 = sbr.rel (%p509) target = $region12
    $region11: #{forward.1} parent=5 // pred_region
      %s513 = ssub.s32 %s27, 1
      // Predicated region
      $region13: #{forward.1} parent=11 // pred_check
        %p514 = pneg %p74
      $region14: #{forward.1} parent=11 // pred_check_branch
        %516 = sbr.rel (%p514) target = $region16
      $region15: #{forward.1} parent=11 // pred_region
        _
      $region16: #{forward.1} parent=11 // pred_fallthru
        _
      // Predicated region
      $region17: #{forward.1} parent=11 // pred_check
        %p517 = pneg %p95
      $region18: #{forward.1} parent=11 // pred_check_branch
        %519 = sbr.rel (%p517) target = $region20
      $region19: #{forward.1} parent=11 // pred_region
        _
      $region20: #{forward.1} parent=11 // pred_fallthru
        _
      // Predicated region
      $region21: #{forward.1} parent=11 // pred_check
        %p520 = pneg %p116
      $region22: #{forward.1} parent=11 // pred_check_branch
        %522 = sbr.rel (%p520) target = $region24
      $region23: #{forward.1} parent=11 // pred_region
        _
      $region24: #{forward.1} parent=11 // pred_fallthru
        _
      // Predicated region
      $region25: #{forward.1} parent=11 // pred_check
        %p523 = pneg %p137
      $region26: #{forward.1} parent=11 // pred_check_branch
        %525 = sbr.rel (%p523) target = $region28
      $region27: #{forward.1} parent=11 // pred_region
        _
      $region28: #{forward.1} parent=11 // pred_fallthru
        _
      // Predicated region
      $region29: #{forward.1} parent=11 // pred_check
        %p526 = pneg %p158
      $region30: #{forward.1} parent=11 // pred_check_branch
        %528 = sbr.rel (%p526) target = $region32
      $region31: #{forward.1} parent=11 // pred_region
        _
      $region32: #{forward.1} parent=11 // pred_fallthru
        _
      // Predicated region
      $region33: #{forward.1} parent=11 // pred_check
        %p529 = pneg %p179
      $region34: #{forward.1} parent=11 // pred_check_branch
        %531 = sbr.rel (%p529) target = $region36
      $region35: #{forward.1} parent=11 // pred_region
        _
      $region36: #{forward.1} parent=11 // pred_fallthru
        _
      // Predicated region
      $region37: #{forward.1} parent=11 // pred_check
        %p532 = pneg %p200
      $region38: #{forward.1} parent=11 // pred_check_branch
        %534 = sbr.rel (%p532) target = $region40
      $region39: #{forward.1} parent=11 // pred_region
        _
      $region40: #{forward.1} parent=11 // pred_fallthru
        _
      // Predicated region
      $region41: #{forward.1} parent=11 // pred_check
        %p535 = pneg %p221
      $region42: #{forward.1} parent=11 // pred_check_branch
        %537 = sbr.rel (%p535) target = $region44
      $region43: #{forward.1} parent=11 // pred_region
        _
      $region44: #{forward.1} parent=11 // pred_fallthru
        _
      // Predicated region
      $region45: #{forward.1} parent=11 // pred_check
        %p538 = pneg %p242
      $region46: #{forward.1} parent=11 // pred_check_branch
        %540 = sbr.rel (%p538) target = $region48
      $region47: #{forward.1} parent=11 // pred_region
        _
      $region48: #{forward.1} parent=11 // pred_fallthru
        _
      // Predicated region
      $region49: #{forward.1} parent=11 // pred_check
        %p541 = pneg %p263
      $region50: #{forward.1} parent=11 // pred_check_branch
        %543 = sbr.rel (%p541) target = $region52
      $region51: #{forward.1} parent=11 // pred_region
        _
      $region52: #{forward.1} parent=11 // pred_fallthru
        _
      // Predicated region
      $region53: #{forward.1} parent=11 // pred_check
        %p544 = pneg %p284
      $region54: #{forward.1} parent=11 // pred_check_branch
        %546 = sbr.rel (%p544) target = $region56
      $region55: #{forward.1} parent=11 // pred_region
        _
      $region56: #{forward.1} parent=11 // pred_fallthru
        _
      // Predicated region
      $region57: #{forward.1} parent=11 // pred_check
        %p547 = pneg %p305
      $region58: #{forward.1} parent=11 // pred_check_branch
        %549 = sbr.rel (%p547) target = $region60
      $region59: #{forward.1} parent=11 // pred_region
        _
      $region60: #{forward.1} parent=11 // pred_fallthru
        _
      // Predicated region
      $region61: #{forward.1} parent=11 // pred_check
        %p550 = pneg %p326
      $region62: #{forward.1} parent=11 // pred_check_branch
        %552 = sbr.rel (%p550) target = $region64
      $region63: #{forward.1} parent=11 // pred_region
        _
      $region64: #{forward.1} parent=11 // pred_fallthru
        _
      // Predicated region
      $region65: #{forward.1} parent=11 // pred_check
        %p553 = pneg %p347
      $region66: #{forward.1} parent=11 // pred_check_branch
        %555 = sbr.rel (%p553) target = $region68
      $region67: #{forward.1} parent=11 // pred_region
        _
      $region68: #{forward.1} parent=11 // pred_fallthru
        _
      // Predicated region
      $region69: #{forward.1} parent=11 // pred_check
        %p556 = pneg %p368
      $region70: #{forward.1} parent=11 // pred_check_branch
        %558 = sbr.rel (%p556) target = $region72
      $region71: #{forward.1} parent=11 // pred_region
        _
      $region72: #{forward.1} parent=11 // pred_fallthru
        _
      // Predicated region
      $region73: #{forward.1} parent=11 // pred_check
        %p559 = pneg %p389
      $region74: #{forward.1} parent=11 // pred_check_branch
        %561 = sbr.rel (%p559) target = $region76
      $region75: #{forward.1} parent=11 // pred_region
        _
      $region76: #{forward.1} parent=11 // pred_fallthru
        _
      // Predicated region
      $region77: #{forward.1} parent=11 // pred_check
        %p562 = pneg %p410
      $region78: #{forward.1} parent=11 // pred_check_branch
        %564 = sbr.rel (%p562) target = $region80
      $region79: #{forward.1} parent=11 // pred_region
        _
      $region80: #{forward.1} parent=11 // pred_fallthru
        _
      // Predicated region
      $region81: #{forward.1} parent=11 // pred_check
        %p565 = pneg %p431
      $region82: #{forward.1} parent=11 // pred_check_branch
        %567 = sbr.rel (%p565) target = $region84
      $region83: #{forward.1} parent=11 // pred_region
        _
      $region84: #{forward.1} parent=11 // pred_fallthru
        _
      // Predicated region
      $region85: #{forward.1} parent=11 // pred_check
        %p568 = pneg %p452
      $region86: #{forward.1} parent=11 // pred_check_branch
        %570 = sbr.rel (%p568) target = $region88
      $region87: #{forward.1} parent=11 // pred_region
        _
      $region88: #{forward.1} parent=11 // pred_fallthru
        _
      // Predicated region
      $region89: #{forward.1} parent=11 // pred_check
        %p571 = pneg %p473
      $region90: #{forward.1} parent=11 // pred_check_branch
        %573 = sbr.rel (%p571) target = $region92
      $region91: #{forward.1} parent=11 // pred_region
        _
      $region92: #{forward.1} parent=11 // pred_fallthru
        _
    $region12: #{forward.1} parent=5 // pred_fallthru
      _
    %p574 = scmp.lt.s32.totalorder %s27, 2
    // Predicated region
    $region93: #{forward.1} parent=5 // pred_check
      %p575 = pneg %p574
    $region94: #{forward.1} parent=5 // pred_check_branch
      %577 = sbr.rel (%p575) target = $region96
    $region95: #{forward.1} parent=5 // pred_region
      // Predicated region
      $region97: #{forward.1} parent=95 // pred_check
        %p578 = pneg %p47
      $region98: #{forward.1} parent=95 // pred_check_branch
        %580 = sbr.rel (%p578) target = $region100
      $region99: #{forward.1} parent=95 // pred_region
        %s581 = smul.u32 16, %s27
        %p582 = scmp.lt.s32.totalorder %s581, 31
        %s583 = scalar_select %p582, %s581, 31
        %s584 = smul.addr %s583, 8
        %s585 = scalar_lea.vmem %s0, %s584
        %s586 = smul.u32 16, %s27
      $region100: #{forward.1} parent=95 // pred_fallthru
        _
    $region96: #{forward.1} parent=5 // pred_fallthru
      _
    %p587 = scmp.le.s32.totalorder 1, %s27
    %p588 = scmp.lt.s32.totalorder %s27, 3
    %p589 = pnand %p587, %p588
    %p590 = pneg %p589
    // Predicated region
    $region101: #{forward.1} parent=5 // pred_check
      _
    $region102: #{forward.1} parent=5 // pred_check_branch
      %592 = sbr.rel (%p589) target = $region104
    $region103: #{forward.1} parent=5 // pred_region
      %s593 = ssub.s32 %s27, 1
      %s594 = smul.u32 16, %s32
      %p595 = scmp.lt.s32.totalorder %s594, 31
      %s596 = scalar_select %p595, %s594, 31
      %s597 = smul.addr %s596, 8
      %s598 = scalar_lea.vmem %s0, %s597
      %p599 = pneg %p53
      %p600 = pneg %p50
      %p601 = pneg %p74
      %p602 = pneg %p71
      %p603 = pneg %p95
      %p604 = pneg %p92
      %p605 = pneg %p116
      %p606 = pneg %p113
      %p607 = pneg %p137
      %p608 = pneg %p134
      %p609 = pneg %p158
      %p610 = pneg %p155
      %p611 = pneg %p179
      %p612 = pneg %p176
      %p613 = pneg %p200
      %p614 = pneg %p197
      %p615 = pneg %p221
      %p616 = pneg %p218
      %p617 = pneg %p242
      %p618 = pneg %p239
      %p619 = pneg %p263
      %p620 = pneg %p260
      %p621 = pneg %p284
      %p622 = pneg %p281
      %p623 = pneg %p305
      %p624 = pneg %p302
      %p625 = pneg %p326
      %p626 = pneg %p323
      %p627 = pneg %p347
      %p628 = pneg %p344
      %p629 = pneg %p368
      %p630 = pneg %p365
      %p631 = pneg %p389
      %p632 = pneg %p386
      %p633 = pneg %p410
      %p634 = pneg %p407
      %p635 = pneg %p431
      %p636 = pneg %p428
      %p637 = pneg %p452
      %p638 = pneg %p449
      %p639 = pneg %p473
      %p640 = pneg %p470
      %p641 = pneg %p499
      %p642 = pneg %p496
      %s643 = smul.u32 16, %s32
      %p644 = scmp.lt.s32.totalorder %s643, 31
      %s645 = scalar_select %p644, %s643, 31
      %s646 = smul.addr %s645, 8
      %s647 = scalar_lea.vmem %s21, %s646
      %s648 = smul.u32 16, %s32
      %p649 = scmp.lt.s32.totalorder %s648, 31
      %s650 = scalar_select %p649, %s648, 31
      %s651 = smul.addr %s650, 8
      %s652 = scalar_lea.vmem %s0, %s651
      %s653 = smul.u32 16, %s32
      %s654 = smul.u32 16, %s32
      %p655 = scmp.lt.s32.totalorder %s654, 31
      %s656 = scalar_select %p655, %s654, 31
      %s657 = smul.addr %s656, 8
      %s658 = scalar_lea.vmem %s21, %s657
      %s659 = smul.u32 16, %s32
      %v660 = vld [vmem:[%s652] sm:$0xff]
      %v661 = vld [vmem:[%s652 + $0x8] sm:$0xff]
      %v662 = vld [vmem:[%s652 + $0x10] sm:$0xff]
      %v663 = vld [vmem:[%s652 + $0x18] sm:$0xff]
      %v664 = vld [vmem:[%s652 + $0x20] sm:$0xff]
      %v665 = vld [vmem:[%s652 + $0x28] sm:$0xff]
      %v666 = vld [vmem:[%s652 + $0x30] sm:$0xff]
      %v667 = vld [vmem:[%s652 + $0x38] sm:$0xff]
      %v668 = vld [vmem:[%s652 + $0x40] sm:$0xff]
      %v669 = vld [vmem:[%s652 + $0x48] sm:$0xff]
      %v670 = vld [vmem:[%s652 + $0x50] sm:$0xff]
      %v671 = vld [vmem:[%s652 + $0x58] sm:$0xff]
      %v672 = vld [vmem:[%s652 + $0x60] sm:$0xff]
      %v673 = vld [vmem:[%s652 + $0x68] sm:$0xff]
      %v674 = vld [vmem:[%s652 + $0x70] sm:$0xff]
      %v675 = vld [vmem:[%s652 + $0x78] sm:$0xff]
      %v676 = vld [vmem:[%s1] sm:$0xff]
      %v677 = vld [vmem:[%s2] sm:$0x1]
      %v679 = vlaneseq
      %v680 = vshrl.u32 %v679, 7
      %v681 = vsub.s32 0, %v680
      %v682 = vrot.slane %v677, %v681
      %vm684 = vcmask 64512
      %v686 = vsel %vm684, %v660, 0
      %v689 = vsel %vm684, %v661, 0
      %v692 = vsel %vm684, %v662, 0
      %v695 = vsel %vm684, %v663, 0
      %v698 = vsel %vm684, %v664, 0
      %v701 = vsel %vm684, %v665, 0
      %v704 = vsel %vm684, %v666, 0
      %v707 = vsel %vm684, %v667, 0
      %v710 = vsel %vm684, %v668, 0
      %v713 = vsel %vm684, %v669, 0
      %v716 = vsel %vm684, %v670, 0
      %v719 = vsel %vm684, %v671, 0
      %v722 = vsel %vm684, %v672, 0
      %v725 = vsel %vm684, %v673, 0
      %v728 = vsel %vm684, %v674, 0
      %v731 = vsel %vm684, %v675, 0
      %733 = vmatprep.subr.mxu0 0.0
      %734 = vmatpush1.msra.mxu0 0.0
      %735 = vmatprep.subr.mxu0 0.0
      %736 = vmatpush1.msra.mxu0 0.0
      %737 = vmatprep.subr.mxu0 0.0
      %738 = vmatpush1.msra.mxu0 0.0
      %739 = vmatprep.subr.mxu0 0.0
      %740 = vmatpush1.msra.mxu0 0.0
      %741 = vmatprep.subr.mxu0 0.0
      %742 = vmatpush1.msra.mxu0 0.0
      %743 = vmatprep.subr.mxu0 0.0
      %744 = vmatpush1.msra.mxu0 0.0
      %745 = vmatprep.subr.mxu0 0.0
      %746 = vmatpush1.msra.mxu0 0.0
      %747 = vmatprep.subr.mxu0 0.0
      %748 = vmatpush1.msra.mxu0 0.0
      %749 = vmatprep.subr.mxu0 0.0
      %750 = vmatpush1.msra.mxu0 0.0
      %751 = vmatprep.subr.mxu0 0.0
      %752 = vmatpush1.msra.mxu0 0.0
      %753 = vmatprep.subr.mxu0 0.0
      %754 = vmatpush1.msra.mxu0 0.0
      %755 = vmatprep.subr.mxu0 0.0
      %756 = vmatpush1.msra.mxu0 0.0
      %757 = vmatprep.subr.mxu0 0.0
      %758 = vmatpush1.msra.mxu0 0.0
      %759 = vmatprep.subr.mxu0 0.0
      %760 = vmatpush1.msra.mxu0 0.0
      %761 = vmatprep.subr.mxu0 0.0
      %762 = vmatpush1.msra.mxu0 0.0
      %763 = vmatprep.subr.mxu0 0.0
      %764 = vmatpush1.msra.mxu0 %v676
      %765 = vmatprep.subr.mxu0 0.0
      %766 = vmatpush2.msra.mxu0 0.0
      %767 = vmatprep.subr.mxu0 0.0
      %768 = vmatpush2.msra.mxu0 0.0
      %769 = vmatprep.subr.mxu0 0.0
      %770 = vmatpush2.msra.mxu0 0.0
      %771 = vmatprep.subr.mxu0 0.0
      %772 = vmatpush2.msra.mxu0 0.0
      %773 = vmatprep.subr.mxu0 0.0
      %774 = vmatpush2.msra.mxu0 0.0
      %775 = vmatprep.subr.mxu0 0.0
      %776 = vmatpush2.msra.mxu0 0.0
      %777 = vmatprep.subr.mxu0 0.0
      %778 = vmatpush2.msra.mxu0 0.0
      %779 = vmatprep.subr.mxu0 0.0
      %780 = vmatpush2.msra.mxu0 0.0
      %781 = vmatprep.subr.mxu0 0.0
      %782 = vmatpush2.msra.mxu0 0.0
      %783 = vmatprep.subr.mxu0 0.0
      %784 = vmatpush2.msra.mxu0 0.0
      %785 = vmatprep.subr.mxu0 0.0
      %786 = vmatpush2.msra.mxu0 0.0
      %787 = vmatprep.subr.mxu0 0.0
      %788 = vmatpush2.msra.mxu0 0.0
      %789 = vmatprep.subr.mxu0 0.0
      %790 = vmatpush2.msra.mxu0 0.0
      %791 = vmatprep.subr.mxu0 0.0
      %792 = vmatpush2.msra.mxu0 0.0
      %793 = vmatprep.subr.mxu0 0.0
      %794 = vmatpush2.msra.mxu0 0.0
      %795 = vmatprep.subr.mxu0 0.0
      %796 = vmatpush2.msra.mxu0 0.0
      %797 = vmatprep.mubr.f32.mxu0 0.0
      %798 = vmatmul.mubr.f32.gmra.mxu0 %v686
      %v799 = vpop.f32.mrf.mxu0
      %v800 = vadd.f32 %v682, %v799
      %v801 = vpop.f32.mrf.mxu0
      %802 = vmatprep.mubr.f32.mxu0 0.0
      %803 = vmatmul.mubr.f32.gmra.mxu0 %v689
      %v804 = vpop.f32.mrf.mxu0
      %v805 = vadd.f32 %v682, %v804
      %v806 = vpop.f32.mrf.mxu0
      %807 = vmatprep.mubr.f32.mxu0 0.0
      %808 = vmatmul.mubr.f32.gmra.mxu0 %v692
      %v809 = vpop.f32.mrf.mxu0
      %v810 = vadd.f32 %v682, %v809
      %v811 = vpop.f32.mrf.mxu0
      %812 = vmatprep.mubr.f32.mxu0 0.0
      %813 = vmatmul.mubr.f32.gmra.mxu0 %v695
      %v814 = vpop.f32.mrf.mxu0
      %v815 = vadd.f32 %v682, %v814
      %v816 = vpop.f32.mrf.mxu0
      %817 = vmatprep.mubr.f32.mxu0 0.0
      %818 = vmatmul.mubr.f32.gmra.mxu0 %v698
      %v819 = vpop.f32.mrf.mxu0
      %v820 = vadd.f32 %v682, %v819
      %v821 = vpop.f32.mrf.mxu0
      %822 = vmatprep.mubr.f32.mxu0 0.0
      %823 = vmatmul.mubr.f32.gmra.mxu0 %v701
      %v824 = vpop.f32.mrf.mxu0
      %v825 = vadd.f32 %v682, %v824
      %v826 = vpop.f32.mrf.mxu0
      %827 = vmatprep.mubr.f32.mxu0 0.0
      %828 = vmatmul.mubr.f32.gmra.mxu0 %v704
      %v829 = vpop.f32.mrf.mxu0
      %v830 = vadd.f32 %v682, %v829
      %v831 = vpop.f32.mrf.mxu0
      %832 = vmatprep.mubr.f32.mxu0 0.0
      %833 = vmatmul.mubr.f32.gmra.mxu0 %v707
      %v834 = vpop.f32.mrf.mxu0
      %v835 = vadd.f32 %v682, %v834
      %v836 = vpop.f32.mrf.mxu0
      %837 = vmatprep.mubr.f32.mxu0 0.0
      %838 = vmatmul.mubr.f32.gmra.mxu0 %v710
      %v839 = vpop.f32.mrf.mxu0
      %v840 = vadd.f32 %v682, %v839
      %v841 = vpop.f32.mrf.mxu0
      %842 = vmatprep.mubr.f32.mxu0 0.0
      %843 = vmatmul.mubr.f32.gmra.mxu0 %v713
      %v844 = vpop.f32.mrf.mxu0
      %v845 = vadd.f32 %v682, %v844
      %v846 = vpop.f32.mrf.mxu0
      %847 = vmatprep.mubr.f32.mxu0 0.0
      %848 = vmatmul.mubr.f32.gmra.mxu0 %v716
      %v849 = vpop.f32.mrf.mxu0
      %v850 = vadd.f32 %v682, %v849
      %v851 = vpop.f32.mrf.mxu0
      %852 = vmatprep.mubr.f32.mxu0 0.0
      %853 = vmatmul.mubr.f32.gmra.mxu0 %v719
      %v854 = vpop.f32.mrf.mxu0
      %v855 = vadd.f32 %v682, %v854
      %v856 = vpop.f32.mrf.mxu0
      %857 = vmatprep.mubr.f32.mxu0 0.0
      %858 = vmatmul.mubr.f32.gmra.mxu0 %v722
      %v859 = vpop.f32.mrf.mxu0
      %v860 = vadd.f32 %v682, %v859
      %v861 = vpop.f32.mrf.mxu0
      %862 = vmatprep.mubr.f32.mxu0 0.0
      %863 = vmatmul.mubr.f32.gmra.mxu0 %v725
      %v864 = vpop.f32.mrf.mxu0
      %v865 = vadd.f32 %v682, %v864
      %v866 = vpop.f32.mrf.mxu0
      %867 = vmatprep.mubr.f32.mxu0 0.0
      %868 = vmatmul.mubr.f32.gmra.mxu0 %v728
      %v869 = vpop.f32.mrf.mxu0
      %v870 = vadd.f32 %v682, %v869
      %v871 = vpop.f32.mrf.mxu0
      %872 = vmatprep.mubr.f32.mxu0 0.0
      %873 = vmatmul.mubr.f32.gmra.mxu0 %v731
      %v874 = vpop.f32.mrf.mxu0
      %v875 = vadd.f32 %v682, %v874
      %v876 = vpop.f32.mrf.mxu0
      %877 = vdwg.mxu0
      %v878 = vmax.f32 %v800, 0.0
      %v879 = vmax.f32 %v805, 0.0
      %v880 = vmax.f32 %v810, 0.0
      %v881 = vmax.f32 %v815, 0.0
      %v882 = vmax.f32 %v820, 0.0
      %v883 = vmax.f32 %v825, 0.0
      %v884 = vmax.f32 %v830, 0.0
      %v885 = vmax.f32 %v835, 0.0
      %v886 = vmax.f32 %v840, 0.0
      %v887 = vmax.f32 %v845, 0.0
      %v888 = vmax.f32 %v850, 0.0
      %v889 = vmax.f32 %v855, 0.0
      %v890 = vmax.f32 %v860, 0.0
      %v891 = vmax.f32 %v865, 0.0
      %v892 = vmax.f32 %v870, 0.0
      %v893 = vmax.f32 %v875, 0.0
      %v894 = vld [vmem:[%s3] sm:$0xff]
      %v895 = vld [vmem:[%s3 + $0x8] sm:$0xff]
      %v896 = vld [vmem:[%s3 + $0x10] sm:$0xff]
      %v897 = vld [vmem:[%s3 + $0x18] sm:$0xff]
      %v898 = vld [vmem:[%s3 + $0x20] sm:$0xff]
      %v899 = vld [vmem:[%s3 + $0x28] sm:$0xff]
      %v900 = vld [vmem:[%s3 + $0x30] sm:$0xff]
      %v901 = vld [vmem:[%s3 + $0x38] sm:$0xff]
      %v902 = vld [vmem:[%s4] sm:$0x1]
      %v904 = vlaneseq
      %v905 = vshrl.u32 %v904, 7
      %v906 = vsub.s32 0, %v905
      %v907 = vrot.slane %v902, %v906
      %vm909 = vcmask 523264
      %v911 = vsel %vm909, %v878, 0
      %v914 = vsel %vm909, %v879, 0
      %v917 = vsel %vm909, %v880, 0
      %v920 = vsel %vm909, %v881, 0
      %v923 = vsel %vm909, %v882, 0
      %v926 = vsel %vm909, %v883, 0
      %v929 = vsel %vm909, %v884, 0
      %v932 = vsel %vm909, %v885, 0
      %v935 = vsel %vm909, %v886, 0
      %v938 = vsel %vm909, %v887, 0
      %v941 = vsel %vm909, %v888, 0
      %v944 = vsel %vm909, %v889, 0
      %v947 = vsel %vm909, %v890, 0
      %v950 = vsel %vm909, %v891, 0
      %v953 = vsel %vm909, %v892, 0
      %v956 = vsel %vm909, %v893, 0
      %958 = vmatprep.subr.mxu0 0.0
      %959 = vmatpush1.msra.mxu0 0.0
      %960 = vmatprep.subr.mxu0 0.0
      %961 = vmatpush1.msra.mxu0 0.0
      %962 = vmatprep.subr.mxu0 0.0
      %963 = vmatpush1.msra.mxu0 0.0
      %964 = vmatprep.subr.mxu0 0.0
      %965 = vmatpush1.msra.mxu0 0.0
      %966 = vmatprep.subr.mxu0 0.0
      %967 = vmatpush1.msra.mxu0 0.0
      %968 = vmatprep.subr.mxu0 0.0
      %969 = vmatpush1.msra.mxu0 0.0
      %970 = vmatprep.subr.mxu0 0.0
      %971 = vmatpush1.msra.mxu0 0.0
      %972 = vmatprep.subr.mxu0 0.0
      %973 = vmatpush1.msra.mxu0 0.0
      %974 = vmatprep.subr.mxu0 0.0
      %975 = vmatpush1.msra.mxu0 %v901
      %976 = vmatprep.subr.mxu0 0.0
      %977 = vmatpush1.msra.mxu0 %v900
      %978 = vmatprep.subr.mxu0 0.0
      %979 = vmatpush1.msra.mxu0 %v899
      %980 = vmatprep.subr.mxu0 0.0
      %981 = vmatpush1.msra.mxu0 %v898
      %982 = vmatprep.subr.mxu0 0.0
      %983 = vmatpush1.msra.mxu0 %v897
      %984 = vmatprep.subr.mxu0 0.0
      %985 = vmatpush1.msra.mxu0 %v896
      %986 = vmatprep.subr.mxu0 0.0
      %987 = vmatpush1.msra.mxu0 %v895
      %988 = vmatprep.subr.mxu0 0.0
      %989 = vmatpush1.msra.mxu0 %v894
      %990 = vmatprep.subr.mxu0 0.0
      %991 = vmatpush2.msra.mxu0 0.0
      %992 = vmatprep.subr.mxu0 0.0
      %993 = vmatpush2.msra.mxu0 0.0
      %994 = vmatprep.subr.mxu0 0.0
      %995 = vmatpush2.msra.mxu0 0.0
      %996 = vmatprep.subr.mxu0 0.0
      %997 = vmatpush2.msra.mxu0 0.0
      %998 = vmatprep.subr.mxu0 0.0
      %999 = vmatpush2.msra.mxu0 0.0
      %1000 = vmatprep.subr.mxu0 0.0
      %1001 = vmatpush2.msra.mxu0 0.0
      %1002 = vmatprep.subr.mxu0 0.0
      %1003 = vmatpush2.msra.mxu0 0.0
      %1004 = vmatprep.subr.mxu0 0.0
      %1005 = vmatpush2.msra.mxu0 0.0
      %1006 = vmatprep.subr.mxu0 0.0
      %1007 = vmatpush2.msra.mxu0 0.0
      %1008 = vmatprep.subr.mxu0 0.0
      %1009 = vmatpush2.msra.mxu0 0.0
      %1010 = vmatprep.subr.mxu0 0.0
      %1011 = vmatpush2.msra.mxu0 0.0
      %1012 = vmatprep.subr.mxu0 0.0
      %1013 = vmatpush2.msra.mxu0 0.0
      %1014 = vmatprep.subr.mxu0 0.0
      %1015 = vmatpush2.msra.mxu0 0.0
      %1016 = vmatprep.subr.mxu0 0.0
      %1017 = vmatpush2.msra.mxu0 0.0
      %1018 = vmatprep.subr.mxu0 0.0
      %1019 = vmatpush2.msra.mxu0 0.0
      %1020 = vmatprep.subr.mxu0 0.0
      %1021 = vmatpush2.msra.mxu0 0.0
      %1022 = vmatprep.mubr.f32.mxu0 0.0
      %1023 = vmatmul.mubr.f32.gmra.mxu0 %v911
      %v1024 = vpop.f32.mrf.mxu0
      %v1025 = vadd.f32 %v907, %v1024
      %v1026 = vpop.f32.mrf.mxu0
      %1027 = vmatprep.mubr.f32.mxu0 0.0
      %1028 = vmatmul.mubr.f32.gmra.mxu0 %v914
      %v1029 = vpop.f32.mrf.mxu0
      %v1030 = vadd.f32 %v907, %v1029
      %v1031 = vpop.f32.mrf.mxu0
      %1032 = vmatprep.mubr.f32.mxu0 0.0
      %1033 = vmatmul.mubr.f32.gmra.mxu0 %v917
      %v1034 = vpop.f32.mrf.mxu0
      %v1035 = vadd.f32 %v907, %v1034
      %v1036 = vpop.f32.mrf.mxu0
      %1037 = vmatprep.mubr.f32.mxu0 0.0
      %1038 = vmatmul.mubr.f32.gmra.mxu0 %v920
      %v1039 = vpop.f32.mrf.mxu0
      %v1040 = vadd.f32 %v907, %v1039
      %v1041 = vpop.f32.mrf.mxu0
      %1042 = vmatprep.mubr.f32.mxu0 0.0
      %1043 = vmatmul.mubr.f32.gmra.mxu0 %v923
      %v1044 = vpop.f32.mrf.mxu0
      %v1045 = vadd.f32 %v907, %v1044
      %v1046 = vpop.f32.mrf.mxu0
      %1047 = vmatprep.mubr.f32.mxu0 0.0
      %1048 = vmatmul.mubr.f32.gmra.mxu0 %v926
      %v1049 = vpop.f32.mrf.mxu0
      %v1050 = vadd.f32 %v907, %v1049
      %v1051 = vpop.f32.mrf.mxu0
      %1052 = vmatprep.mubr.f32.mxu0 0.0
      %1053 = vmatmul.mubr.f32.gmra.mxu0 %v929
      %v1054 = vpop.f32.mrf.mxu0
      %v1055 = vadd.f32 %v907, %v1054
      %v1056 = vpop.f32.mrf.mxu0
      %1057 = vmatprep.mubr.f32.mxu0 0.0
      %1058 = vmatmul.mubr.f32.gmra.mxu0 %v932
      %v1059 = vpop.f32.mrf.mxu0
      %v1060 = vadd.f32 %v907, %v1059
      %v1061 = vpop.f32.mrf.mxu0
      %1062 = vmatprep.mubr.f32.mxu0 0.0
      %1063 = vmatmul.mubr.f32.gmra.mxu0 %v935
      %v1064 = vpop.f32.mrf.mxu0
      %v1065 = vadd.f32 %v907, %v1064
      %v1066 = vpop.f32.mrf.mxu0
      %1067 = vmatprep.mubr.f32.mxu0 0.0
      %1068 = vmatmul.mubr.f32.gmra.mxu0 %v938
      %v1069 = vpop.f32.mrf.mxu0
      %v1070 = vadd.f32 %v907, %v1069
      %v1071 = vpop.f32.mrf.mxu0
      %1072 = vmatprep.mubr.f32.mxu0 0.0
      %1073 = vmatmul.mubr.f32.gmra.mxu0 %v941
      %v1074 = vpop.f32.mrf.mxu0
      %v1075 = vadd.f32 %v907, %v1074
      %v1076 = vpop.f32.mrf.mxu0
      %1077 = vmatprep.mubr.f32.mxu0 0.0
      %1078 = vmatmul.mubr.f32.gmra.mxu0 %v944
      %v1079 = vpop.f32.mrf.mxu0
      %v1080 = vadd.f32 %v907, %v1079
      %v1081 = vpop.f32.mrf.mxu0
      %1082 = vmatprep.mubr.f32.mxu0 0.0
      %1083 = vmatmul.mubr.f32.gmra.mxu0 %v947
      %v1084 = vpop.f32.mrf.mxu0
      %v1085 = vadd.f32 %v907, %v1084
      %v1086 = vpop.f32.mrf.mxu0
      %1087 = vmatprep.mubr.f32.mxu0 0.0
      %1088 = vmatmul.mubr.f32.gmra.mxu0 %v950
      %v1089 = vpop.f32.mrf.mxu0
      %v1090 = vadd.f32 %v907, %v1089
      %v1091 = vpop.f32.mrf.mxu0
      %1092 = vmatprep.mubr.f32.mxu0 0.0
      %1093 = vmatmul.mubr.f32.gmra.mxu0 %v953
      %v1094 = vpop.f32.mrf.mxu0
      %v1095 = vadd.f32 %v907, %v1094
      %v1096 = vpop.f32.mrf.mxu0
      %1097 = vmatprep.mubr.f32.mxu0 0.0
      %1098 = vmatmul.mubr.f32.gmra.mxu0 %v956
      %v1099 = vpop.f32.mrf.mxu0
      %v1100 = vadd.f32 %v907, %v1099
      %v1101 = vpop.f32.mrf.mxu0
      %1102 = vdwg.mxu0
      %v1103 = vtanh.pop %v1025
      %v1104 = vtanh.pop %v1030
      %v1105 = vtanh.pop %v1035
      %v1106 = vtanh.pop %v1040
      %v1107 = vtanh.pop %v1045
      %v1108 = vtanh.pop %v1050
      %v1109 = vtanh.pop %v1055
      %v1110 = vtanh.pop %v1060
      %v1111 = vtanh.pop %v1065
      %v1112 = vtanh.pop %v1070
      %v1113 = vtanh.pop %v1075
      %v1114 = vtanh.pop %v1080
      %v1115 = vtanh.pop %v1085
      %v1116 = vtanh.pop %v1090
      %v1117 = vtanh.pop %v1095
      %v1118 = vtanh.pop %v1100
      %v1119 = vld [vmem:[%s5] sm:$0xff]
      %v1120 = vld [vmem:[%s5 + $0x8] sm:$0xff]
      %v1121 = vld [vmem:[%s5 + $0x10] sm:$0xff]
      %v1122 = vld [vmem:[%s5 + $0x18] sm:$0xff]
      %v1123 = vld [vmem:[%s5 + $0x20] sm:$0xff]
      %v1124 = vld [vmem:[%s5 + $0x28] sm:$0xff]
      %v1125 = vld [vmem:[%s5 + $0x30] sm:$0xff]
      %v1126 = vld [vmem:[%s5 + $0x38] sm:$0xff]
      %v1127 = vld [vmem:[%s6] sm:$0x1]
      %v1129 = vlaneseq
      %v1130 = vshrl.u32 %v1129, 7
      %v1131 = vsub.s32 0, %v1130
      %v1132 = vrot.slane %v1127, %v1131
      %v1135 = vsel %vm909, %v1103, 0
      %v1138 = vsel %vm909, %v1104, 0
      %v1141 = vsel %vm909, %v1105, 0
      %v1144 = vsel %vm909, %v1106, 0
      %v1147 = vsel %vm909, %v1107, 0
      %v1150 = vsel %vm909, %v1108, 0
      %v1153 = vsel %vm909, %v1109, 0
      %v1156 = vsel %vm909, %v1110, 0
      %v1159 = vsel %vm909, %v1111, 0
      %v1162 = vsel %vm909, %v1112, 0
      %v1165 = vsel %vm909, %v1113, 0
      %v1168 = vsel %vm909, %v1114, 0
      %v1171 = vsel %vm909, %v1115, 0
      %v1174 = vsel %vm909, %v1116, 0
      %v1177 = vsel %vm909, %v1117, 0
      %v1180 = vsel %vm909, %v1118, 0
      %1182 = vmatprep.subr.mxu0 0.0
      %1183 = vmatpush1.msra.mxu0 0.0
      %1184 = vmatprep.subr.mxu0 0.0
      %1185 = vmatpush1.msra.mxu0 0.0
      %1186 = vmatprep.subr.mxu0 0.0
      %1187 = vmatpush1.msra.mxu0 0.0
      %1188 = vmatprep.subr.mxu0 0.0
      %1189 = vmatpush1.msra.mxu0 0.0
      %1190 = vmatprep.subr.mxu0 0.0
      %1191 = vmatpush1.msra.mxu0 0.0
      %1192 = vmatprep.subr.mxu0 0.0
      %1193 = vmatpush1.msra.mxu0 0.0
      %1194 = vmatprep.subr.mxu0 0.0
      %1195 = vmatpush1.msra.mxu0 0.0
      %1196 = vmatprep.subr.mxu0 0.0
      %1197 = vmatpush1.msra.mxu0 0.0
      %1198 = vmatprep.subr.mxu0 0.0
      %1199 = vmatpush1.msra.mxu0 %v1126
      %1200 = vmatprep.subr.mxu0 0.0
      %1201 = vmatpush1.msra.mxu0 %v1125
      %1202 = vmatprep.subr.mxu0 0.0
      %1203 = vmatpush1.msra.mxu0 %v1124
      %1204 = vmatprep.subr.mxu0 0.0
      %1205 = vmatpush1.msra.mxu0 %v1123
      %1206 = vmatprep.subr.mxu0 0.0
      %1207 = vmatpush1.msra.mxu0 %v1122
      %1208 = vmatprep.subr.mxu0 0.0
      %1209 = vmatpush1.msra.mxu0 %v1121
      %1210 = vmatprep.subr.mxu0 0.0
      %1211 = vmatpush1.msra.mxu0 %v1120
      %1212 = vmatprep.subr.mxu0 0.0
      %1213 = vmatpush1.msra.mxu0 %v1119
      %1214 = vmatprep.subr.mxu0 0.0
      %1215 = vmatpush2.msra.mxu0 0.0
      %1216 = vmatprep.subr.mxu0 0.0
      %1217 = vmatpush2.msra.mxu0 0.0
      %1218 = vmatprep.subr.mxu0 0.0
      %1219 = vmatpush2.msra.mxu0 0.0
      %1220 = vmatprep.subr.mxu0 0.0
      %1221 = vmatpush2.msra.mxu0 0.0
      %1222 = vmatprep.subr.mxu0 0.0
      %1223 = vmatpush2.msra.mxu0 0.0
      %1224 = vmatprep.subr.mxu0 0.0
      %1225 = vmatpush2.msra.mxu0 0.0
      %1226 = vmatprep.subr.mxu0 0.0
      %1227 = vmatpush2.msra.mxu0 0.0
      %1228 = vmatprep.subr.mxu0 0.0
      %1229 = vmatpush2.msra.mxu0 0.0
      %1230 = vmatprep.subr.mxu0 0.0
      %1231 = vmatpush2.msra.mxu0 0.0
      %1232 = vmatprep.subr.mxu0 0.0
      %1233 = vmatpush2.msra.mxu0 0.0
      %1234 = vmatprep.subr.mxu0 0.0
      %1235 = vmatpush2.msra.mxu0 0.0
      %1236 = vmatprep.subr.mxu0 0.0
      %1237 = vmatpush2.msra.mxu0 0.0
      %1238 = vmatprep.subr.mxu0 0.0
      %1239 = vmatpush2.msra.mxu0 0.0
      %1240 = vmatprep.subr.mxu0 0.0
      %1241 = vmatpush2.msra.mxu0 0.0
      %1242 = vmatprep.subr.mxu0 0.0
      %1243 = vmatpush2.msra.mxu0 0.0
      %1244 = vmatprep.subr.mxu0 0.0
      %1245 = vmatpush2.msra.mxu0 0.0
      %1246 = vmatprep.mubr.f32.mxu0 0.0
      %1247 = vmatmul.mubr.f32.gmra.mxu0 %v1135
      %v1248 = vpop.f32.mrf.mxu0
      %v1249 = vadd.f32 %v1132, %v1248
      %v1250 = vpop.f32.mrf.mxu0
      %1251 = vmatprep.mubr.f32.mxu0 0.0
      %1252 = vmatmul.mubr.f32.gmra.mxu0 %v1138
      %v1253 = vpop.f32.mrf.mxu0
      %v1254 = vadd.f32 %v1132, %v1253
      %v1255 = vpop.f32.mrf.mxu0
      %1256 = vmatprep.mubr.f32.mxu0 0.0
      %1257 = vmatmul.mubr.f32.gmra.mxu0 %v1141
      %v1258 = vpop.f32.mrf.mxu0
      %v1259 = vadd.f32 %v1132, %v1258
      %v1260 = vpop.f32.mrf.mxu0
      %1261 = vmatprep.mubr.f32.mxu0 0.0
      %1262 = vmatmul.mubr.f32.gmra.mxu0 %v1144
      %v1263 = vpop.f32.mrf.mxu0
      %v1264 = vadd.f32 %v1132, %v1263
      %v1265 = vpop.f32.mrf.mxu0
      %1266 = vmatprep.mubr.f32.mxu0 0.0
      %1267 = vmatmul.mubr.f32.gmra.mxu0 %v1147
      %v1268 = vpop.f32.mrf.mxu0
      %v1269 = vadd.f32 %v1132, %v1268
      %v1270 = vpop.f32.mrf.mxu0
      %1271 = vmatprep.mubr.f32.mxu0 0.0
      %1272 = vmatmul.mubr.f32.gmra.mxu0 %v1150
      %v1273 = vpop.f32.mrf.mxu0
      %v1274 = vadd.f32 %v1132, %v1273
      %v1275 = vpop.f32.mrf.mxu0
      %1276 = vmatprep.mubr.f32.mxu0 0.0
      %1277 = vmatmul.mubr.f32.gmra.mxu0 %v1153
      %v1278 = vpop.f32.mrf.mxu0
      %v1279 = vadd.f32 %v1132, %v1278
      %v1280 = vpop.f32.mrf.mxu0
      %1281 = vmatprep.mubr.f32.mxu0 0.0
      %1282 = vmatmul.mubr.f32.gmra.mxu0 %v1156
      %v1283 = vpop.f32.mrf.mxu0
      %v1284 = vadd.f32 %v1132, %v1283
      %v1285 = vpop.f32.mrf.mxu0
      %1286 = vmatprep.mubr.f32.mxu0 0.0
      %1287 = vmatmul.mubr.f32.gmra.mxu0 %v1159
      %v1288 = vpop.f32.mrf.mxu0
      %v1289 = vadd.f32 %v1132, %v1288
      %v1290 = vpop.f32.mrf.mxu0
      %1291 = vmatprep.mubr.f32.mxu0 0.0
      %1292 = vmatmul.mubr.f32.gmra.mxu0 %v1162
      %v1293 = vpop.f32.mrf.mxu0
      %v1294 = vadd.f32 %v1132, %v1293
      %v1295 = vpop.f32.mrf.mxu0
      %1296 = vmatprep.mubr.f32.mxu0 0.0
      %1297 = vmatmul.mubr.f32.gmra.mxu0 %v1165
      %v1298 = vpop.f32.mrf.mxu0
      %v1299 = vadd.f32 %v1132, %v1298
      %v1300 = vpop.f32.mrf.mxu0
      %1301 = vmatprep.mubr.f32.mxu0 0.0
      %1302 = vmatmul.mubr.f32.gmra.mxu0 %v1168
      %v1303 = vpop.f32.mrf.mxu0
      %v1304 = vadd.f32 %v1132, %v1303
      %v1305 = vpop.f32.mrf.mxu0
      %1306 = vmatprep.mubr.f32.mxu0 0.0
      %1307 = vmatmul.mubr.f32.gmra.mxu0 %v1171
      %v1308 = vpop.f32.mrf.mxu0
      %v1309 = vadd.f32 %v1132, %v1308
      %v1310 = vpop.f32.mrf.mxu0
      %1311 = vmatprep.mubr.f32.mxu0 0.0
      %1312 = vmatmul.mubr.f32.gmra.mxu0 %v1174
      %v1313 = vpop.f32.mrf.mxu0
      %v1314 = vadd.f32 %v1132, %v1313
      %v1315 = vpop.f32.mrf.mxu0
      %1316 = vmatprep.mubr.f32.mxu0 0.0
      %1317 = vmatmul.mubr.f32.gmra.mxu0 %v1177
      %v1318 = vpop.f32.mrf.mxu0
      %v1319 = vadd.f32 %v1132, %v1318
      %v1320 = vpop.f32.mrf.mxu0
      %1321 = vmatprep.mubr.f32.mxu0 0.0
      %1322 = vmatmul.mubr.f32.gmra.mxu0 %v1180
      %v1323 = vpop.f32.mrf.mxu0
      %v1324 = vadd.f32 %v1132, %v1323
      %v1325 = vpop.f32.mrf.mxu0
      %1326 = vdwg.mxu0
      %v1327 = vld [vmem:[%s7] sm:$0xff]
      %v1328 = vld [vmem:[%s7 + $0x8] sm:$0xff]
      %v1329 = vld [vmem:[%s7 + $0x10] sm:$0xff]
      %v1330 = vld [vmem:[%s7 + $0x18] sm:$0xff]
      %v1331 = vld [vmem:[%s7 + $0x20] sm:$0xff]
      %v1332 = vld [vmem:[%s7 + $0x28] sm:$0xff]
      %v1333 = vld [vmem:[%s7 + $0x30] sm:$0xff]
      %v1334 = vld [vmem:[%s7 + $0x38] sm:$0xff]
      %v1335 = vld [vmem:[%s8] sm:$0x1]
      %v1337 = vlaneseq
      %v1338 = vshrl.u32 %v1337, 7
      %v1339 = vsub.s32 0, %v1338
      %v1340 = vrot.slane %v1335, %v1339
      %v1343 = vsel %vm909, %v1249, 0
      %v1346 = vsel %vm909, %v1254, 0
      %v1349 = vsel %vm909, %v1259, 0
      %v1352 = vsel %vm909, %v1264, 0
      %v1355 = vsel %vm909, %v1269, 0
      %v1358 = vsel %vm909, %v1274, 0
      %v1361 = vsel %vm909, %v1279, 0
      %v1364 = vsel %vm909, %v1284, 0
      %v1367 = vsel %vm909, %v1289, 0
      %v1370 = vsel %vm909, %v1294, 0
      %v1373 = vsel %vm909, %v1299, 0
      %v1376 = vsel %vm909, %v1304, 0
      %v1379 = vsel %vm909, %v1309, 0
      %v1382 = vsel %vm909, %v1314, 0
      %v1385 = vsel %vm909, %v1319, 0
      %v1388 = vsel %vm909, %v1324, 0
      %1390 = vmatprep.subr.mxu0 0.0
      %1391 = vmatpush1.msra.mxu0 0.0
      %1392 = vmatprep.subr.mxu0 0.0
      %1393 = vmatpush1.msra.mxu0 0.0
      %1394 = vmatprep.subr.mxu0 0.0
      %1395 = vmatpush1.msra.mxu0 0.0
      %1396 = vmatprep.subr.mxu0 0.0
      %1397 = vmatpush1.msra.mxu0 0.0
      %1398 = vmatprep.subr.mxu0 0.0
      %1399 = vmatpush1.msra.mxu0 0.0
      %1400 = vmatprep.subr.mxu0 0.0
      %1401 = vmatpush1.msra.mxu0 0.0
      %1402 = vmatprep.subr.mxu0 0.0
      %1403 = vmatpush1.msra.mxu0 0.0
      %1404 = vmatprep.subr.mxu0 0.0
      %1405 = vmatpush1.msra.mxu0 0.0
      %1406 = vmatprep.subr.mxu0 0.0
      %1407 = vmatpush1.msra.mxu0 %v1334
      %1408 = vmatprep.subr.mxu0 0.0
      %1409 = vmatpush1.msra.mxu0 %v1333
      %1410 = vmatprep.subr.mxu0 0.0
      %1411 = vmatpush1.msra.mxu0 %v1332
      %1412 = vmatprep.subr.mxu0 0.0
      %1413 = vmatpush1.msra.mxu0 %v1331
      %1414 = vmatprep.subr.mxu0 0.0
      %1415 = vmatpush1.msra.mxu0 %v1330
      %1416 = vmatprep.subr.mxu0 0.0
      %1417 = vmatpush1.msra.mxu0 %v1329
      %1418 = vmatprep.subr.mxu0 0.0
      %1419 = vmatpush1.msra.mxu0 %v1328
      %1420 = vmatprep.subr.mxu0 0.0
      %1421 = vmatpush1.msra.mxu0 %v1327
      %1422 = vmatprep.subr.mxu0 0.0
      %1423 = vmatpush2.msra.mxu0 0.0
      %1424 = vmatprep.subr.mxu0 0.0
      %1425 = vmatpush2.msra.mxu0 0.0
      %1426 = vmatprep.subr.mxu0 0.0
      %1427 = vmatpush2.msra.mxu0 0.0
      %1428 = vmatprep.subr.mxu0 0.0
      %1429 = vmatpush2.msra.mxu0 0.0
      %1430 = vmatprep.subr.mxu0 0.0
      %1431 = vmatpush2.msra.mxu0 0.0
      %1432 = vmatprep.subr.mxu0 0.0
      %1433 = vmatpush2.msra.mxu0 0.0
      %1434 = vmatprep.subr.mxu0 0.0
      %1435 = vmatpush2.msra.mxu0 0.0
      %1436 = vmatprep.subr.mxu0 0.0
      %1437 = vmatpush2.msra.mxu0 0.0
      %1438 = vmatprep.subr.mxu0 0.0
      %1439 = vmatpush2.msra.mxu0 0.0
      %1440 = vmatprep.subr.mxu0 0.0
      %1441 = vmatpush2.msra.mxu0 0.0
      %1442 = vmatprep.subr.mxu0 0.0
      %1443 = vmatpush2.msra.mxu0 0.0
      %1444 = vmatprep.subr.mxu0 0.0
      %1445 = vmatpush2.msra.mxu0 0.0
      %1446 = vmatprep.subr.mxu0 0.0
      %1447 = vmatpush2.msra.mxu0 0.0
      %1448 = vmatprep.subr.mxu0 0.0
      %1449 = vmatpush2.msra.mxu0 0.0
      %1450 = vmatprep.subr.mxu0 0.0
      %1451 = vmatpush2.msra.mxu0 0.0
      %1452 = vmatprep.subr.mxu0 0.0
      %1453 = vmatpush2.msra.mxu0 0.0
      %1454 = vmatprep.mubr.f32.mxu0 0.0
      %1455 = vmatmul.mubr.f32.gmra.mxu0 %v1343
      %v1456 = vpop.f32.mrf.mxu0
      %v1457 = vadd.f32 %v1340, %v1456
      %v1458 = vpop.f32.mrf.mxu0
      %1459 = vmatprep.mubr.f32.mxu0 0.0
      %1460 = vmatmul.mubr.f32.gmra.mxu0 %v1346
      %v1461 = vpop.f32.mrf.mxu0
      %v1462 = vadd.f32 %v1340, %v1461
      %v1463 = vpop.f32.mrf.mxu0
      %1464 = vmatprep.mubr.f32.mxu0 0.0
      %1465 = vmatmul.mubr.f32.gmra.mxu0 %v1349
      %v1466 = vpop.f32.mrf.mxu0
      %v1467 = vadd.f32 %v1340, %v1466
      %v1468 = vpop.f32.mrf.mxu0
      %1469 = vmatprep.mubr.f32.mxu0 0.0
      %1470 = vmatmul.mubr.f32.gmra.mxu0 %v1352
      %v1471 = vpop.f32.mrf.mxu0
      %v1472 = vadd.f32 %v1340, %v1471
      %v1473 = vpop.f32.mrf.mxu0
      %1474 = vmatprep.mubr.f32.mxu0 0.0
      %1475 = vmatmul.mubr.f32.gmra.mxu0 %v1355
      %v1476 = vpop.f32.mrf.mxu0
      %v1477 = vadd.f32 %v1340, %v1476
      %v1478 = vpop.f32.mrf.mxu0
      %1479 = vmatprep.mubr.f32.mxu0 0.0
      %1480 = vmatmul.mubr.f32.gmra.mxu0 %v1358
      %v1481 = vpop.f32.mrf.mxu0
      %v1482 = vadd.f32 %v1340, %v1481
      %v1483 = vpop.f32.mrf.mxu0
      %1484 = vmatprep.mubr.f32.mxu0 0.0
      %1485 = vmatmul.mubr.f32.gmra.mxu0 %v1361
      %v1486 = vpop.f32.mrf.mxu0
      %v1487 = vadd.f32 %v1340, %v1486
      %v1488 = vpop.f32.mrf.mxu0
      %1489 = vmatprep.mubr.f32.mxu0 0.0
      %1490 = vmatmul.mubr.f32.gmra.mxu0 %v1364
      %v1491 = vpop.f32.mrf.mxu0
      %v1492 = vadd.f32 %v1340, %v1491
      %v1493 = vpop.f32.mrf.mxu0
      %1494 = vmatprep.mubr.f32.mxu0 0.0
      %1495 = vmatmul.mubr.f32.gmra.mxu0 %v1367
      %v1496 = vpop.f32.mrf.mxu0
      %v1497 = vadd.f32 %v1340, %v1496
      %v1498 = vpop.f32.mrf.mxu0
      %1499 = vmatprep.mubr.f32.mxu0 0.0
      %1500 = vmatmul.mubr.f32.gmra.mxu0 %v1370
      %v1501 = vpop.f32.mrf.mxu0
      %v1502 = vadd.f32 %v1340, %v1501
      %v1503 = vpop.f32.mrf.mxu0
      %1504 = vmatprep.mubr.f32.mxu0 0.0
      %1505 = vmatmul.mubr.f32.gmra.mxu0 %v1373
      %v1506 = vpop.f32.mrf.mxu0
      %v1507 = vadd.f32 %v1340, %v1506
      %v1508 = vpop.f32.mrf.mxu0
      %1509 = vmatprep.mubr.f32.mxu0 0.0
      %1510 = vmatmul.mubr.f32.gmra.mxu0 %v1376
      %v1511 = vpop.f32.mrf.mxu0
      %v1512 = vadd.f32 %v1340, %v1511
      %v1513 = vpop.f32.mrf.mxu0
      %1514 = vmatprep.mubr.f32.mxu0 0.0
      %1515 = vmatmul.mubr.f32.gmra.mxu0 %v1379
      %v1516 = vpop.f32.mrf.mxu0
      %v1517 = vadd.f32 %v1340, %v1516
      %v1518 = vpop.f32.mrf.mxu0
      %1519 = vmatprep.mubr.f32.mxu0 0.0
      %1520 = vmatmul.mubr.f32.gmra.mxu0 %v1382
      %v1521 = vpop.f32.mrf.mxu0
      %v1522 = vadd.f32 %v1340, %v1521
      %v1523 = vpop.f32.mrf.mxu0
      %1524 = vmatprep.mubr.f32.mxu0 0.0
      %1525 = vmatmul.mubr.f32.gmra.mxu0 %v1385
      %v1526 = vpop.f32.mrf.mxu0
      %v1527 = vadd.f32 %v1340, %v1526
      %v1528 = vpop.f32.mrf.mxu0
      %1529 = vmatprep.mubr.f32.mxu0 0.0
      %1530 = vmatmul.mubr.f32.gmra.mxu0 %v1388
      %v1531 = vpop.f32.mrf.mxu0
      %v1532 = vadd.f32 %v1340, %v1531
      %v1533 = vpop.f32.mrf.mxu0
      %1534 = vdwg.mxu0
      %v1535 = vmax.f32 %v1457, 0.0
      %v1536 = vmax.f32 %v1462, 0.0
      %v1537 = vmax.f32 %v1467, 0.0
      %v1538 = vmax.f32 %v1472, 0.0
      %v1539 = vmax.f32 %v1477, 0.0
      %v1540 = vmax.f32 %v1482, 0.0
      %v1541 = vmax.f32 %v1487, 0.0
      %v1542 = vmax.f32 %v1492, 0.0
      %v1543 = vmax.f32 %v1497, 0.0
      %v1544 = vmax.f32 %v1502, 0.0
      %v1545 = vmax.f32 %v1507, 0.0
      %v1546 = vmax.f32 %v1512, 0.0
      %v1547 = vmax.f32 %v1517, 0.0
      %v1548 = vmax.f32 %v1522, 0.0
      %v1549 = vmax.f32 %v1527, 0.0
      %v1550 = vmax.f32 %v1532, 0.0
      %v1551 = vld [vmem:[%s9] sm:$0xff]
      %v1552 = vld [vmem:[%s9 + $0x8] sm:$0xff]
      %v1553 = vld [vmem:[%s9 + $0x10] sm:$0xff]
      %v1554 = vld [vmem:[%s9 + $0x18] sm:$0xff]
      %v1555 = vld [vmem:[%s9 + $0x20] sm:$0xff]
      %v1556 = vld [vmem:[%s9 + $0x28] sm:$0xff]
      %v1557 = vld [vmem:[%s9 + $0x30] sm:$0xff]
      %v1558 = vld [vmem:[%s9 + $0x38] sm:$0xff]
      %v1559 = vld [vmem:[%s9 + $0x40] sm:$0xff]
      %v1560 = vld [vmem:[%s9 + $0x48] sm:$0xff]
      %v1561 = vld [vmem:[%s9 + $0x50] sm:$0xff]
      %v1562 = vld [vmem:[%s9 + $0x58] sm:$0xff]
      %v1563 = vld [vmem:[%s9 + $0x60] sm:$0xff]
      %v1564 = vld [vmem:[%s9 + $0x68] sm:$0xff]
      %v1565 = vld [vmem:[%s9 + $0x70] sm:$0xff]
      %v1566 = vld [vmem:[%s9 + $0x78] sm:$0xff]
      %v1567 = vld [vmem:[%s10] sm:$0x1]
      %v1569 = vlaneseq
      %v1570 = vshrl.u32 %v1569, 7
      %v1571 = vsub.s32 0, %v1570
      %v1572 = vrot.slane %v1567, %v1571
      %1574 = vmatprep.subr.mxu0 0.0
      %1575 = vmatpush1.msra.mxu0 %v1566
      %1576 = vmatprep.subr.mxu0 0.0
      %1577 = vmatpush1.msra.mxu0 %v1565
      %1578 = vmatprep.subr.mxu0 0.0
      %1579 = vmatpush1.msra.mxu0 %v1564
      %1580 = vmatprep.subr.mxu0 0.0
      %1581 = vmatpush1.msra.mxu0 %v1563
      %1582 = vmatprep.subr.mxu0 0.0
      %1583 = vmatpush1.msra.mxu0 %v1562
      %1584 = vmatprep.subr.mxu0 0.0
      %1585 = vmatpush1.msra.mxu0 %v1561
      %1586 = vmatprep.subr.mxu0 0.0
      %1587 = vmatpush1.msra.mxu0 %v1560
      %1588 = vmatprep.subr.mxu0 0.0
      %1589 = vmatpush1.msra.mxu0 %v1559
      %1590 = vmatprep.subr.mxu0 0.0
      %1591 = vmatpush1.msra.mxu0 %v1558
      %1592 = vmatprep.subr.mxu0 0.0
      %1593 = vmatpush1.msra.mxu0 %v1557
      %1594 = vmatprep.subr.mxu0 0.0
      %1595 = vmatpush1.msra.mxu0 %v1556
      %1596 = vmatprep.subr.mxu0 0.0
      %1597 = vmatpush1.msra.mxu0 %v1555
      %1598 = vmatprep.subr.mxu0 0.0
      %1599 = vmatpush1.msra.mxu0 %v1554
      %1600 = vmatprep.subr.mxu0 0.0
      %1601 = vmatpush1.msra.mxu0 %v1553
      %1602 = vmatprep.subr.mxu0 0.0
      %1603 = vmatpush1.msra.mxu0 %v1552
      %1604 = vmatprep.subr.mxu0 0.0
      %1605 = vmatpush1.msra.mxu0 %v1551
      %1606 = vmatprep.subr.mxu0 0.0
      %1607 = vmatpush2.msra.mxu0 0.0
      %1608 = vmatprep.subr.mxu0 0.0
      %1609 = vmatpush2.msra.mxu0 0.0
      %1610 = vmatprep.subr.mxu0 0.0
      %1611 = vmatpush2.msra.mxu0 0.0
      %1612 = vmatprep.subr.mxu0 0.0
      %1613 = vmatpush2.msra.mxu0 0.0
      %1614 = vmatprep.subr.mxu0 0.0
      %1615 = vmatpush2.msra.mxu0 0.0
      %1616 = vmatprep.subr.mxu0 0.0
      %1617 = vmatpush2.msra.mxu0 0.0
      %1618 = vmatprep.subr.mxu0 0.0
      %1619 = vmatpush2.msra.mxu0 0.0
      %1620 = vmatprep.subr.mxu0 0.0
      %1621 = vmatpush2.msra.mxu0 0.0
      %1622 = vmatprep.subr.mxu0 0.0
      %1623 = vmatpush2.msra.mxu0 0.0
      %1624 = vmatprep.subr.mxu0 0.0
      %1625 = vmatpush2.msra.mxu0 0.0
      %1626 = vmatprep.subr.mxu0 0.0
      %1627 = vmatpush2.msra.mxu0 0.0
      %1628 = vmatprep.subr.mxu0 0.0
      %1629 = vmatpush2.msra.mxu0 0.0
      %1630 = vmatprep.subr.mxu0 0.0
      %1631 = vmatpush2.msra.mxu0 0.0
      %1632 = vmatprep.subr.mxu0 0.0
      %1633 = vmatpush2.msra.mxu0 0.0
      %1634 = vmatprep.subr.mxu0 0.0
      %1635 = vmatpush2.msra.mxu0 0.0
      %1636 = vmatprep.subr.mxu0 0.0
      %1637 = vmatpush2.msra.mxu0 0.0
      %1638 = vmatprep.mubr.f32.mxu0 0.0
      %1639 = vmatmul.mubr.f32.gmra.mxu0 %v1535
      %v1640 = vpop.f32.mrf.mxu0
      %v1641 = vadd.f32 %v1572, %v1640
      %v1642 = vpop.f32.mrf.mxu0
      %1643 = vmatprep.mubr.f32.mxu0 0.0
      %1644 = vmatmul.mubr.f32.gmra.mxu0 %v1536
      %v1645 = vpop.f32.mrf.mxu0
      %v1646 = vadd.f32 %v1572, %v1645
      %v1647 = vpop.f32.mrf.mxu0
      %1648 = vmatprep.mubr.f32.mxu0 0.0
      %1649 = vmatmul.mubr.f32.gmra.mxu0 %v1537
      %v1650 = vpop.f32.mrf.mxu0
      %v1651 = vadd.f32 %v1572, %v1650
      %v1652 = vpop.f32.mrf.mxu0
      %1653 = vmatprep.mubr.f32.mxu0 0.0
      %1654 = vmatmul.mubr.f32.gmra.mxu0 %v1538
      %v1655 = vpop.f32.mrf.mxu0
      %v1656 = vadd.f32 %v1572, %v1655
      %v1657 = vpop.f32.mrf.mxu0
      %1658 = vmatprep.mubr.f32.mxu0 0.0
      %1659 = vmatmul.mubr.f32.gmra.mxu0 %v1539
      %v1660 = vpop.f32.mrf.mxu0
      %v1661 = vadd.f32 %v1572, %v1660
      %v1662 = vpop.f32.mrf.mxu0
      %1663 = vmatprep.mubr.f32.mxu0 0.0
      %1664 = vmatmul.mubr.f32.gmra.mxu0 %v1540
      %v1665 = vpop.f32.mrf.mxu0
      %v1666 = vadd.f32 %v1572, %v1665
      %v1667 = vpop.f32.mrf.mxu0
      %1668 = vmatprep.mubr.f32.mxu0 0.0
      %1669 = vmatmul.mubr.f32.gmra.mxu0 %v1541
      %v1670 = vpop.f32.mrf.mxu0
      %v1671 = vadd.f32 %v1572, %v1670
      %v1672 = vpop.f32.mrf.mxu0
      %1673 = vmatprep.mubr.f32.mxu0 0.0
      %1674 = vmatmul.mubr.f32.gmra.mxu0 %v1542
      %v1675 = vpop.f32.mrf.mxu0
      %v1676 = vadd.f32 %v1572, %v1675
      %v1677 = vpop.f32.mrf.mxu0
      %1678 = vmatprep.mubr.f32.mxu0 0.0
      %1679 = vmatmul.mubr.f32.gmra.mxu0 %v1543
      %v1680 = vpop.f32.mrf.mxu0
      %v1681 = vadd.f32 %v1572, %v1680
      %v1682 = vpop.f32.mrf.mxu0
      %1683 = vmatprep.mubr.f32.mxu0 0.0
      %1684 = vmatmul.mubr.f32.gmra.mxu0 %v1544
      %v1685 = vpop.f32.mrf.mxu0
      %v1686 = vadd.f32 %v1572, %v1685
      %v1687 = vpop.f32.mrf.mxu0
      %1688 = vmatprep.mubr.f32.mxu0 0.0
      %1689 = vmatmul.mubr.f32.gmra.mxu0 %v1545
      %v1690 = vpop.f32.mrf.mxu0
      %v1691 = vadd.f32 %v1572, %v1690
      %v1692 = vpop.f32.mrf.mxu0
      %1693 = vmatprep.mubr.f32.mxu0 0.0
      %1694 = vmatmul.mubr.f32.gmra.mxu0 %v1546
      %v1695 = vpop.f32.mrf.mxu0
      %v1696 = vadd.f32 %v1572, %v1695
      %v1697 = vpop.f32.mrf.mxu0
      %1698 = vmatprep.mubr.f32.mxu0 0.0
      %1699 = vmatmul.mubr.f32.gmra.mxu0 %v1547
      %v1700 = vpop.f32.mrf.mxu0
      %v1701 = vadd.f32 %v1572, %v1700
      %v1702 = vpop.f32.mrf.mxu0
      %1703 = vmatprep.mubr.f32.mxu0 0.0
      %1704 = vmatmul.mubr.f32.gmra.mxu0 %v1548
      %v1705 = vpop.f32.mrf.mxu0
      %v1706 = vadd.f32 %v1572, %v1705
      %v1707 = vpop.f32.mrf.mxu0
      %1708 = vmatprep.mubr.f32.mxu0 0.0
      %1709 = vmatmul.mubr.f32.gmra.mxu0 %v1549
      %v1710 = vpop.f32.mrf.mxu0
      %v1711 = vadd.f32 %v1572, %v1710
      %v1712 = vpop.f32.mrf.mxu0
      %1713 = vmatprep.mubr.f32.mxu0 0.0
      %1714 = vmatmul.mubr.f32.gmra.mxu0 %v1550
      %v1715 = vpop.f32.mrf.mxu0
      %v1716 = vadd.f32 %v1572, %v1715
      %v1717 = vpop.f32.mrf.mxu0
      %1718 = vdwg.mxu0
      %v1719 = vtanh.pop %v1641
      %v1720 = vtanh.pop %v1646
      %v1721 = vtanh.pop %v1651
      %v1722 = vtanh.pop %v1656
      %v1723 = vtanh.pop %v1661
      %v1724 = vtanh.pop %v1666
      %v1725 = vtanh.pop %v1671
      %v1726 = vtanh.pop %v1676
      %v1727 = vtanh.pop %v1681
      %v1728 = vtanh.pop %v1686
      %v1729 = vtanh.pop %v1691
      %v1730 = vtanh.pop %v1696
      %v1731 = vtanh.pop %v1701
      %v1732 = vtanh.pop %v1706
      %v1733 = vtanh.pop %v1711
      %v1734 = vtanh.pop %v1716
      %v1735 = vld [vmem:[%s11] sm:$0xff]
      %v1736 = vld [vmem:[%s11 + $0x8] sm:$0xff]
      %v1737 = vld [vmem:[%s11 + $0x10] sm:$0xff]
      %v1738 = vld [vmem:[%s11 + $0x18] sm:$0xff]
      %v1739 = vld [vmem:[%s11 + $0x20] sm:$0xff]
      %v1740 = vld [vmem:[%s11 + $0x28] sm:$0xff]
      %v1741 = vld [vmem:[%s11 + $0x30] sm:$0xff]
      %v1742 = vld [vmem:[%s11 + $0x38] sm:$0xff]
      %v1743 = vld [vmem:[%s11 + $0x40] sm:$0xff]
      %v1744 = vld [vmem:[%s11 + $0x48] sm:$0xff]
      %v1745 = vld [vmem:[%s11 + $0x50] sm:$0xff]
      %v1746 = vld [vmem:[%s11 + $0x58] sm:$0xff]
      %v1747 = vld [vmem:[%s11 + $0x60] sm:$0xff]
      %v1748 = vld [vmem:[%s11 + $0x68] sm:$0xff]
      %v1749 = vld [vmem:[%s11 + $0x70] sm:$0xff]
      %v1750 = vld [vmem:[%s11 + $0x78] sm:$0xff]
      %v1751 = vld [vmem:[%s12] sm:$0x1]
      %v1753 = vlaneseq
      %v1754 = vshrl.u32 %v1753, 7
      %v1755 = vsub.s32 0, %v1754
      %v1756 = vrot.slane %v1751, %v1755
      %1758 = vmatprep.subr.mxu0 0.0
      %1759 = vmatpush1.msra.mxu0 %v1750
      %1760 = vmatprep.subr.mxu0 0.0
      %1761 = vmatpush1.msra.mxu0 %v1749
      %1762 = vmatprep.subr.mxu0 0.0
      %1763 = vmatpush1.msra.mxu0 %v1748
      %1764 = vmatprep.subr.mxu0 0.0
      %1765 = vmatpush1.msra.mxu0 %v1747
      %1766 = vmatprep.subr.mxu0 0.0
      %1767 = vmatpush1.msra.mxu0 %v1746
      %1768 = vmatprep.subr.mxu0 0.0
      %1769 = vmatpush1.msra.mxu0 %v1745
      %1770 = vmatprep.subr.mxu0 0.0
      %1771 = vmatpush1.msra.mxu0 %v1744
      %1772 = vmatprep.subr.mxu0 0.0
      %1773 = vmatpush1.msra.mxu0 %v1743
      %1774 = vmatprep.subr.mxu0 0.0
      %1775 = vmatpush1.msra.mxu0 %v1742
      %1776 = vmatprep.subr.mxu0 0.0
      %1777 = vmatpush1.msra.mxu0 %v1741
      %1778 = vmatprep.subr.mxu0 0.0
      %1779 = vmatpush1.msra.mxu0 %v1740
      %1780 = vmatprep.subr.mxu0 0.0
      %1781 = vmatpush1.msra.mxu0 %v1739
      %1782 = vmatprep.subr.mxu0 0.0
      %1783 = vmatpush1.msra.mxu0 %v1738
      %1784 = vmatprep.subr.mxu0 0.0
      %1785 = vmatpush1.msra.mxu0 %v1737
      %1786 = vmatprep.subr.mxu0 0.0
      %1787 = vmatpush1.msra.mxu0 %v1736
      %1788 = vmatprep.subr.mxu0 0.0
      %1789 = vmatpush1.msra.mxu0 %v1735
      %1790 = vmatprep.subr.mxu0 0.0
      %1791 = vmatpush2.msra.mxu0 0.0
      %1792 = vmatprep.subr.mxu0 0.0
      %1793 = vmatpush2.msra.mxu0 0.0
      %1794 = vmatprep.subr.mxu0 0.0
      %1795 = vmatpush2.msra.mxu0 0.0
      %1796 = vmatprep.subr.mxu0 0.0
      %1797 = vmatpush2.msra.mxu0 0.0
      %1798 = vmatprep.subr.mxu0 0.0
      %1799 = vmatpush2.msra.mxu0 0.0
      %1800 = vmatprep.subr.mxu0 0.0
      %1801 = vmatpush2.msra.mxu0 0.0
      %1802 = vmatprep.subr.mxu0 0.0
      %1803 = vmatpush2.msra.mxu0 0.0
      %1804 = vmatprep.subr.mxu0 0.0
      %1805 = vmatpush2.msra.mxu0 0.0
      %1806 = vmatprep.subr.mxu0 0.0
      %1807 = vmatpush2.msra.mxu0 0.0
      %1808 = vmatprep.subr.mxu0 0.0
      %1809 = vmatpush2.msra.mxu0 0.0
      %1810 = vmatprep.subr.mxu0 0.0
      %1811 = vmatpush2.msra.mxu0 0.0
      %1812 = vmatprep.subr.mxu0 0.0
      %1813 = vmatpush2.msra.mxu0 0.0
      %1814 = vmatprep.subr.mxu0 0.0
      %1815 = vmatpush2.msra.mxu0 0.0
      %1816 = vmatprep.subr.mxu0 0.0
      %1817 = vmatpush2.msra.mxu0 0.0
      %1818 = vmatprep.subr.mxu0 0.0
      %1819 = vmatpush2.msra.mxu0 0.0
      %1820 = vmatprep.subr.mxu0 0.0
      %1821 = vmatpush2.msra.mxu0 0.0
      %1822 = vmatprep.mubr.f32.mxu0 0.0
      %1823 = vmatmul.mubr.f32.gmra.mxu0 %v1719
      %v1824 = vpop.f32.mrf.mxu0
      %v1825 = vadd.f32 %v1756, %v1824
      %v1826 = vpop.f32.mrf.mxu0
      %1827 = vmatprep.mubr.f32.mxu0 0.0
      %1828 = vmatmul.mubr.f32.gmra.mxu0 %v1720
      %v1829 = vpop.f32.mrf.mxu0
      %v1830 = vadd.f32 %v1756, %v1829
      %v1831 = vpop.f32.mrf.mxu0
      %1832 = vmatprep.mubr.f32.mxu0 0.0
      %1833 = vmatmul.mubr.f32.gmra.mxu0 %v1721
      %v1834 = vpop.f32.mrf.mxu0
      %v1835 = vadd.f32 %v1756, %v1834
      %v1836 = vpop.f32.mrf.mxu0
      %1837 = vmatprep.mubr.f32.mxu0 0.0
      %1838 = vmatmul.mubr.f32.gmra.mxu0 %v1722
      %v1839 = vpop.f32.mrf.mxu0
      %v1840 = vadd.f32 %v1756, %v1839
      %v1841 = vpop.f32.mrf.mxu0
      %1842 = vmatprep.mubr.f32.mxu0 0.0
      %1843 = vmatmul.mubr.f32.gmra.mxu0 %v1723
      %v1844 = vpop.f32.mrf.mxu0
      %v1845 = vadd.f32 %v1756, %v1844
      %v1846 = vpop.f32.mrf.mxu0
      %1847 = vmatprep.mubr.f32.mxu0 0.0
      %1848 = vmatmul.mubr.f32.gmra.mxu0 %v1724
      %v1849 = vpop.f32.mrf.mxu0
      %v1850 = vadd.f32 %v1756, %v1849
      %v1851 = vpop.f32.mrf.mxu0
      %1852 = vmatprep.mubr.f32.mxu0 0.0
      %1853 = vmatmul.mubr.f32.gmra.mxu0 %v1725
      %v1854 = vpop.f32.mrf.mxu0
      %v1855 = vadd.f32 %v1756, %v1854
      %v1856 = vpop.f32.mrf.mxu0
      %1857 = vmatprep.mubr.f32.mxu0 0.0
      %1858 = vmatmul.mubr.f32.gmra.mxu0 %v1726
      %v1859 = vpop.f32.mrf.mxu0
      %v1860 = vadd.f32 %v1756, %v1859
      %v1861 = vpop.f32.mrf.mxu0
      %1862 = vmatprep.mubr.f32.mxu0 0.0
      %1863 = vmatmul.mubr.f32.gmra.mxu0 %v1727
      %v1864 = vpop.f32.mrf.mxu0
      %v1865 = vadd.f32 %v1756, %v1864
      %v1866 = vpop.f32.mrf.mxu0
      %1867 = vmatprep.mubr.f32.mxu0 0.0
      %1868 = vmatmul.mubr.f32.gmra.mxu0 %v1728
      %v1869 = vpop.f32.mrf.mxu0
      %v1870 = vadd.f32 %v1756, %v1869
      %v1871 = vpop.f32.mrf.mxu0
      %1872 = vmatprep.mubr.f32.mxu0 0.0
      %1873 = vmatmul.mubr.f32.gmra.mxu0 %v1729
      %v1874 = vpop.f32.mrf.mxu0
      %v1875 = vadd.f32 %v1756, %v1874
      %v1876 = vpop.f32.mrf.mxu0
      %1877 = vmatprep.mubr.f32.mxu0 0.0
      %1878 = vmatmul.mubr.f32.gmra.mxu0 %v1730
      %v1879 = vpop.f32.mrf.mxu0
      %v1880 = vadd.f32 %v1756, %v1879
      %v1881 = vpop.f32.mrf.mxu0
      %1882 = vmatprep.mubr.f32.mxu0 0.0
      %1883 = vmatmul.mubr.f32.gmra.mxu0 %v1731
      %v1884 = vpop.f32.mrf.mxu0
      %v1885 = vadd.f32 %v1756, %v1884
      %v1886 = vpop.f32.mrf.mxu0
      %1887 = vmatprep.mubr.f32.mxu0 0.0
      %1888 = vmatmul.mubr.f32.gmra.mxu0 %v1732
      %v1889 = vpop.f32.mrf.mxu0
      %v1890 = vadd.f32 %v1756, %v1889
      %v1891 = vpop.f32.mrf.mxu0
      %1892 = vmatprep.mubr.f32.mxu0 0.0
      %1893 = vmatmul.mubr.f32.gmra.mxu0 %v1733
      %v1894 = vpop.f32.mrf.mxu0
      %v1895 = vadd.f32 %v1756, %v1894
      %v1896 = vpop.f32.mrf.mxu0
      %1897 = vmatprep.mubr.f32.mxu0 0.0
      %1898 = vmatmul.mubr.f32.gmra.mxu0 %v1734
      %v1899 = vpop.f32.mrf.mxu0
      %v1900 = vadd.f32 %v1756, %v1899
      %v1901 = vpop.f32.mrf.mxu0
      %1902 = vdwg.mxu0
      %v1903 = vld [vmem:[%s13] sm:$0xff]
      %v1904 = vld [vmem:[%s13 + $0x8] sm:$0xff]
      %v1905 = vld [vmem:[%s13 + $0x10] sm:$0xff]
      %v1906 = vld [vmem:[%s13 + $0x18] sm:$0xff]
      %v1907 = vld [vmem:[%s13 + $0x20] sm:$0xff]
      %v1908 = vld [vmem:[%s13 + $0x28] sm:$0xff]
      %v1909 = vld [vmem:[%s13 + $0x30] sm:$0xff]
      %v1910 = vld [vmem:[%s13 + $0x38] sm:$0xff]
      %v1911 = vld [vmem:[%s13 + $0x40] sm:$0xff]
      %v1912 = vld [vmem:[%s13 + $0x48] sm:$0xff]
      %v1913 = vld [vmem:[%s13 + $0x50] sm:$0xff]
      %v1914 = vld [vmem:[%s13 + $0x58] sm:$0xff]
      %v1915 = vld [vmem:[%s13 + $0x60] sm:$0xff]
      %v1916 = vld [vmem:[%s13 + $0x68] sm:$0xff]
      %v1917 = vld [vmem:[%s13 + $0x70] sm:$0xff]
      %v1918 = vld [vmem:[%s13 + $0x78] sm:$0xff]
      %v1919 = vld [vmem:[%s14] sm:$0x1]
      %v1921 = vlaneseq
      %v1922 = vshrl.u32 %v1921, 7
      %v1923 = vsub.s32 0, %v1922
      %v1924 = vrot.slane %v1919, %v1923
      %1926 = vmatprep.subr.mxu0 0.0
      %1927 = vmatpush1.msra.mxu0 %v1918
      %1928 = vmatprep.subr.mxu0 0.0
      %1929 = vmatpush1.msra.mxu0 %v1917
      %1930 = vmatprep.subr.mxu0 0.0
      %1931 = vmatpush1.msra.mxu0 %v1916
      %1932 = vmatprep.subr.mxu0 0.0
      %1933 = vmatpush1.msra.mxu0 %v1915
      %1934 = vmatprep.subr.mxu0 0.0
      %1935 = vmatpush1.msra.mxu0 %v1914
      %1936 = vmatprep.subr.mxu0 0.0
      %1937 = vmatpush1.msra.mxu0 %v1913
      %1938 = vmatprep.subr.mxu0 0.0
      %1939 = vmatpush1.msra.mxu0 %v1912
      %1940 = vmatprep.subr.mxu0 0.0
      %1941 = vmatpush1.msra.mxu0 %v1911
      %1942 = vmatprep.subr.mxu0 0.0
      %1943 = vmatpush1.msra.mxu0 %v1910
      %1944 = vmatprep.subr.mxu0 0.0
      %1945 = vmatpush1.msra.mxu0 %v1909
      %1946 = vmatprep.subr.mxu0 0.0
      %1947 = vmatpush1.msra.mxu0 %v1908
      %1948 = vmatprep.subr.mxu0 0.0
      %1949 = vmatpush1.msra.mxu0 %v1907
      %1950 = vmatprep.subr.mxu0 0.0
      %1951 = vmatpush1.msra.mxu0 %v1906
      %1952 = vmatprep.subr.mxu0 0.0
      %1953 = vmatpush1.msra.mxu0 %v1905
      %1954 = vmatprep.subr.mxu0 0.0
      %1955 = vmatpush1.msra.mxu0 %v1904
      %1956 = vmatprep.subr.mxu0 0.0
      %1957 = vmatpush1.msra.mxu0 %v1903
      %1958 = vmatprep.subr.mxu0 0.0
      %1959 = vmatpush2.msra.mxu0 0.0
      %1960 = vmatprep.subr.mxu0 0.0
      %1961 = vmatpush2.msra.mxu0 0.0
      %1962 = vmatprep.subr.mxu0 0.0
      %1963 = vmatpush2.msra.mxu0 0.0
      %1964 = vmatprep.subr.mxu0 0.0
      %1965 = vmatpush2.msra.mxu0 0.0
      %1966 = vmatprep.subr.mxu0 0.0
      %1967 = vmatpush2.msra.mxu0 0.0
      %1968 = vmatprep.subr.mxu0 0.0
      %1969 = vmatpush2.msra.mxu0 0.0
      %1970 = vmatprep.subr.mxu0 0.0
      %1971 = vmatpush2.msra.mxu0 0.0
      %1972 = vmatprep.subr.mxu0 0.0
      %1973 = vmatpush2.msra.mxu0 0.0
      %1974 = vmatprep.subr.mxu0 0.0
      %1975 = vmatpush2.msra.mxu0 0.0
      %1976 = vmatprep.subr.mxu0 0.0
      %1977 = vmatpush2.msra.mxu0 0.0
      %1978 = vmatprep.subr.mxu0 0.0
      %1979 = vmatpush2.msra.mxu0 0.0
      %1980 = vmatprep.subr.mxu0 0.0
      %1981 = vmatpush2.msra.mxu0 0.0
      %1982 = vmatprep.subr.mxu0 0.0
      %1983 = vmatpush2.msra.mxu0 0.0
      %1984 = vmatprep.subr.mxu0 0.0
      %1985 = vmatpush2.msra.mxu0 0.0
      %1986 = vmatprep.subr.mxu0 0.0
      %1987 = vmatpush2.msra.mxu0 0.0
      %1988 = vmatprep.subr.mxu0 0.0
      %1989 = vmatpush2.msra.mxu0 0.0
      %1990 = vmatprep.mubr.f32.mxu0 0.0
      %1991 = vmatmul.mubr.f32.gmra.mxu0 %v1825
      %v1992 = vpop.f32.mrf.mxu0
      %v1993 = vadd.f32 %v1924, %v1992
      %v1994 = vpop.f32.mrf.mxu0
      %1995 = vmatprep.mubr.f32.mxu0 0.0
      %1996 = vmatmul.mubr.f32.gmra.mxu0 %v1830
      %v1997 = vpop.f32.mrf.mxu0
      %v1998 = vadd.f32 %v1924, %v1997
      %v1999 = vpop.f32.mrf.mxu0
      %2000 = vmatprep.mubr.f32.mxu0 0.0
      %2001 = vmatmul.mubr.f32.gmra.mxu0 %v1835
      %v2002 = vpop.f32.mrf.mxu0
      %v2003 = vadd.f32 %v1924, %v2002
      %v2004 = vpop.f32.mrf.mxu0
      %2005 = vmatprep.mubr.f32.mxu0 0.0
      %2006 = vmatmul.mubr.f32.gmra.mxu0 %v1840
      %v2007 = vpop.f32.mrf.mxu0
      %v2008 = vadd.f32 %v1924, %v2007
      %v2009 = vpop.f32.mrf.mxu0
      %2010 = vmatprep.mubr.f32.mxu0 0.0
      %2011 = vmatmul.mubr.f32.gmra.mxu0 %v1845
      %v2012 = vpop.f32.mrf.mxu0
      %v2013 = vadd.f32 %v1924, %v2012
      %v2014 = vpop.f32.mrf.mxu0
      %2015 = vmatprep.mubr.f32.mxu0 0.0
      %2016 = vmatmul.mubr.f32.gmra.mxu0 %v1850
      %v2017 = vpop.f32.mrf.mxu0
      %v2018 = vadd.f32 %v1924, %v2017
      %v2019 = vpop.f32.mrf.mxu0
      %2020 = vmatprep.mubr.f32.mxu0 0.0
      %2021 = vmatmul.mubr.f32.gmra.mxu0 %v1855
      %v2022 = vpop.f32.mrf.mxu0
      %v2023 = vadd.f32 %v1924, %v2022
      %v2024 = vpop.f32.mrf.mxu0
      %2025 = vmatprep.mubr.f32.mxu0 0.0
      %2026 = vmatmul.mubr.f32.gmra.mxu0 %v1860
      %v2027 = vpop.f32.mrf.mxu0
      %v2028 = vadd.f32 %v1924, %v2027
      %v2029 = vpop.f32.mrf.mxu0
      %2030 = vmatprep.mubr.f32.mxu0 0.0
      %2031 = vmatmul.mubr.f32.gmra.mxu0 %v1865
      %v2032 = vpop.f32.mrf.mxu0
      %v2033 = vadd.f32 %v1924, %v2032
      %v2034 = vpop.f32.mrf.mxu0
      %2035 = vmatprep.mubr.f32.mxu0 0.0
      %2036 = vmatmul.mubr.f32.gmra.mxu0 %v1870
      %v2037 = vpop.f32.mrf.mxu0
      %v2038 = vadd.f32 %v1924, %v2037
      %v2039 = vpop.f32.mrf.mxu0
      %2040 = vmatprep.mubr.f32.mxu0 0.0
      %2041 = vmatmul.mubr.f32.gmra.mxu0 %v1875
      %v2042 = vpop.f32.mrf.mxu0
      %v2043 = vadd.f32 %v1924, %v2042
      %v2044 = vpop.f32.mrf.mxu0
      %2045 = vmatprep.mubr.f32.mxu0 0.0
      %2046 = vmatmul.mubr.f32.gmra.mxu0 %v1880
      %v2047 = vpop.f32.mrf.mxu0
      %v2048 = vadd.f32 %v1924, %v2047
      %v2049 = vpop.f32.mrf.mxu0
      %2050 = vmatprep.mubr.f32.mxu0 0.0
      %2051 = vmatmul.mubr.f32.gmra.mxu0 %v1885
      %v2052 = vpop.f32.mrf.mxu0
      %v2053 = vadd.f32 %v1924, %v2052
      %v2054 = vpop.f32.mrf.mxu0
      %2055 = vmatprep.mubr.f32.mxu0 0.0
      %2056 = vmatmul.mubr.f32.gmra.mxu0 %v1890
      %v2057 = vpop.f32.mrf.mxu0
      %v2058 = vadd.f32 %v1924, %v2057
      %v2059 = vpop.f32.mrf.mxu0
      %2060 = vmatprep.mubr.f32.mxu0 0.0
      %2061 = vmatmul.mubr.f32.gmra.mxu0 %v1895
      %v2062 = vpop.f32.mrf.mxu0
      %v2063 = vadd.f32 %v1924, %v2062
      %v2064 = vpop.f32.mrf.mxu0
      %2065 = vmatprep.mubr.f32.mxu0 0.0
      %2066 = vmatmul.mubr.f32.gmra.mxu0 %v1900
      %v2067 = vpop.f32.mrf.mxu0
      %v2068 = vadd.f32 %v1924, %v2067
      %v2069 = vpop.f32.mrf.mxu0
      %2070 = vdwg.mxu0
      %v2071 = vmax.f32 %v1993, 0.0
      %v2072 = vmax.f32 %v1998, 0.0
      %v2073 = vmax.f32 %v2003, 0.0
      %v2074 = vmax.f32 %v2008, 0.0
      %v2075 = vmax.f32 %v2013, 0.0
      %v2076 = vmax.f32 %v2018, 0.0
      %v2077 = vmax.f32 %v2023, 0.0
      %v2078 = vmax.f32 %v2028, 0.0
      %v2079 = vmax.f32 %v2033, 0.0
      %v2080 = vmax.f32 %v2038, 0.0
      %v2081 = vmax.f32 %v2043, 0.0
      %v2082 = vmax.f32 %v2048, 0.0
      %v2083 = vmax.f32 %v2053, 0.0
      %v2084 = vmax.f32 %v2058, 0.0
      %v2085 = vmax.f32 %v2063, 0.0
      %v2086 = vmax.f32 %v2068, 0.0
      %v2087 = vld [vmem:[%s15] sm:$0xff]
      %v2088 = vld [vmem:[%s15 + $0x8] sm:$0xff]
      %v2089 = vld [vmem:[%s15 + $0x10] sm:$0xff]
      %v2090 = vld [vmem:[%s15 + $0x18] sm:$0xff]
      %v2091 = vld [vmem:[%s15 + $0x20] sm:$0xff]
      %v2092 = vld [vmem:[%s15 + $0x28] sm:$0xff]
      %v2093 = vld [vmem:[%s15 + $0x30] sm:$0xff]
      %v2094 = vld [vmem:[%s15 + $0x38] sm:$0xff]
      %v2095 = vld [vmem:[%s16] sm:$0x1]
      %v2097 = vlaneseq
      %v2098 = vshrl.u32 %v2097, 7
      %v2099 = vsub.s32 0, %v2098
      %v2100 = vrot.slane %v2095, %v2099
      %v2103 = vsel %vm909, %v2071, 0
      %v2106 = vsel %vm909, %v2072, 0
      %v2109 = vsel %vm909, %v2073, 0
      %v2112 = vsel %vm909, %v2074, 0
      %v2115 = vsel %vm909, %v2075, 0
      %v2118 = vsel %vm909, %v2076, 0
      %v2121 = vsel %vm909, %v2077, 0
      %v2124 = vsel %vm909, %v2078, 0
      %v2127 = vsel %vm909, %v2079, 0
      %v2130 = vsel %vm909, %v2080, 0
      %v2133 = vsel %vm909, %v2081, 0
      %v2136 = vsel %vm909, %v2082, 0
      %v2139 = vsel %vm909, %v2083, 0
      %v2142 = vsel %vm909, %v2084, 0
      %v2145 = vsel %vm909, %v2085, 0
      %v2148 = vsel %vm909, %v2086, 0
      %2150 = vmatprep.subr.mxu0 0.0
      %2151 = vmatpush1.msra.mxu0 0.0
      %2152 = vmatprep.subr.mxu0 0.0
      %2153 = vmatpush1.msra.mxu0 0.0
      %2154 = vmatprep.subr.mxu0 0.0
      %2155 = vmatpush1.msra.mxu0 0.0
      %2156 = vmatprep.subr.mxu0 0.0
      %2157 = vmatpush1.msra.mxu0 0.0
      %2158 = vmatprep.subr.mxu0 0.0
      %2159 = vmatpush1.msra.mxu0 0.0
      %2160 = vmatprep.subr.mxu0 0.0
      %2161 = vmatpush1.msra.mxu0 0.0
      %2162 = vmatprep.subr.mxu0 0.0
      %2163 = vmatpush1.msra.mxu0 0.0
      %2164 = vmatprep.subr.mxu0 0.0
      %2165 = vmatpush1.msra.mxu0 0.0
      %2166 = vmatprep.subr.mxu0 0.0
      %2167 = vmatpush1.msra.mxu0 %v2094
      %2168 = vmatprep.subr.mxu0 0.0
      %2169 = vmatpush1.msra.mxu0 %v2093
      %2170 = vmatprep.subr.mxu0 0.0
      %2171 = vmatpush1.msra.mxu0 %v2092
      %2172 = vmatprep.subr.mxu0 0.0
      %2173 = vmatpush1.msra.mxu0 %v2091
      %2174 = vmatprep.subr.mxu0 0.0
      %2175 = vmatpush1.msra.mxu0 %v2090
      %2176 = vmatprep.subr.mxu0 0.0
      %2177 = vmatpush1.msra.mxu0 %v2089
      %2178 = vmatprep.subr.mxu0 0.0
      %2179 = vmatpush1.msra.mxu0 %v2088
      %2180 = vmatprep.subr.mxu0 0.0
      %2181 = vmatpush1.msra.mxu0 %v2087
      %2182 = vmatprep.subr.mxu0 0.0
      %2183 = vmatpush2.msra.mxu0 0.0
      %2184 = vmatprep.subr.mxu0 0.0
      %2185 = vmatpush2.msra.mxu0 0.0
      %2186 = vmatprep.subr.mxu0 0.0
      %2187 = vmatpush2.msra.mxu0 0.0
      %2188 = vmatprep.subr.mxu0 0.0
      %2189 = vmatpush2.msra.mxu0 0.0
      %2190 = vmatprep.subr.mxu0 0.0
      %2191 = vmatpush2.msra.mxu0 0.0
      %2192 = vmatprep.subr.mxu0 0.0
      %2193 = vmatpush2.msra.mxu0 0.0
      %2194 = vmatprep.subr.mxu0 0.0
      %2195 = vmatpush2.msra.mxu0 0.0
      %2196 = vmatprep.subr.mxu0 0.0
      %2197 = vmatpush2.msra.mxu0 0.0
      %2198 = vmatprep.subr.mxu0 0.0
      %2199 = vmatpush2.msra.mxu0 0.0
      %2200 = vmatprep.subr.mxu0 0.0
      %2201 = vmatpush2.msra.mxu0 0.0
      %2202 = vmatprep.subr.mxu0 0.0
      %2203 = vmatpush2.msra.mxu0 0.0
      %2204 = vmatprep.subr.mxu0 0.0
      %2205 = vmatpush2.msra.mxu0 0.0
      %2206 = vmatprep.subr.mxu0 0.0
      %2207 = vmatpush2.msra.mxu0 0.0
      %2208 = vmatprep.subr.mxu0 0.0
      %2209 = vmatpush2.msra.mxu0 0.0
      %2210 = vmatprep.subr.mxu0 0.0
      %2211 = vmatpush2.msra.mxu0 0.0
      %2212 = vmatprep.subr.mxu0 0.0
      %2213 = vmatpush2.msra.mxu0 0.0
      %2214 = vmatprep.mubr.f32.mxu0 0.0
      %2215 = vmatmul.mubr.f32.gmra.mxu0 %v2103
      %v2216 = vpop.f32.mrf.mxu0
      %v2217 = vadd.f32 %v2100, %v2216
      %v2218 = vpop.f32.mrf.mxu0
      %2219 = vmatprep.mubr.f32.mxu0 0.0
      %2220 = vmatmul.mubr.f32.gmra.mxu0 %v2106
      %v2221 = vpop.f32.mrf.mxu0
      %v2222 = vadd.f32 %v2100, %v2221
      %v2223 = vpop.f32.mrf.mxu0
      %2224 = vmatprep.mubr.f32.mxu0 0.0
      %2225 = vmatmul.mubr.f32.gmra.mxu0 %v2109
      %v2226 = vpop.f32.mrf.mxu0
      %v2227 = vadd.f32 %v2100, %v2226
      %v2228 = vpop.f32.mrf.mxu0
      %2229 = vmatprep.mubr.f32.mxu0 0.0
      %2230 = vmatmul.mubr.f32.gmra.mxu0 %v2112
      %v2231 = vpop.f32.mrf.mxu0
      %v2232 = vadd.f32 %v2100, %v2231
      %v2233 = vpop.f32.mrf.mxu0
      %2234 = vmatprep.mubr.f32.mxu0 0.0
      %2235 = vmatmul.mubr.f32.gmra.mxu0 %v2115
      %v2236 = vpop.f32.mrf.mxu0
      %v2237 = vadd.f32 %v2100, %v2236
      %v2238 = vpop.f32.mrf.mxu0
      %2239 = vmatprep.mubr.f32.mxu0 0.0
      %2240 = vmatmul.mubr.f32.gmra.mxu0 %v2118
      %v2241 = vpop.f32.mrf.mxu0
      %v2242 = vadd.f32 %v2100, %v2241
      %v2243 = vpop.f32.mrf.mxu0
      %2244 = vmatprep.mubr.f32.mxu0 0.0
      %2245 = vmatmul.mubr.f32.gmra.mxu0 %v2121
      %v2246 = vpop.f32.mrf.mxu0
      %v2247 = vadd.f32 %v2100, %v2246
      %v2248 = vpop.f32.mrf.mxu0
      %2249 = vmatprep.mubr.f32.mxu0 0.0
      %2250 = vmatmul.mubr.f32.gmra.mxu0 %v2124
      %v2251 = vpop.f32.mrf.mxu0
      %v2252 = vadd.f32 %v2100, %v2251
      %v2253 = vpop.f32.mrf.mxu0
      %2254 = vmatprep.mubr.f32.mxu0 0.0
      %2255 = vmatmul.mubr.f32.gmra.mxu0 %v2127
      %v2256 = vpop.f32.mrf.mxu0
      %v2257 = vadd.f32 %v2100, %v2256
      %v2258 = vpop.f32.mrf.mxu0
      %2259 = vmatprep.mubr.f32.mxu0 0.0
      %2260 = vmatmul.mubr.f32.gmra.mxu0 %v2130
      %v2261 = vpop.f32.mrf.mxu0
      %v2262 = vadd.f32 %v2100, %v2261
      %v2263 = vpop.f32.mrf.mxu0
      %2264 = vmatprep.mubr.f32.mxu0 0.0
      %2265 = vmatmul.mubr.f32.gmra.mxu0 %v2133
      %v2266 = vpop.f32.mrf.mxu0
      %v2267 = vadd.f32 %v2100, %v2266
      %v2268 = vpop.f32.mrf.mxu0
      %2269 = vmatprep.mubr.f32.mxu0 0.0
      %2270 = vmatmul.mubr.f32.gmra.mxu0 %v2136
      %v2271 = vpop.f32.mrf.mxu0
      %v2272 = vadd.f32 %v2100, %v2271
      %v2273 = vpop.f32.mrf.mxu0
      %2274 = vmatprep.mubr.f32.mxu0 0.0
      %2275 = vmatmul.mubr.f32.gmra.mxu0 %v2139
      %v2276 = vpop.f32.mrf.mxu0
      %v2277 = vadd.f32 %v2100, %v2276
      %v2278 = vpop.f32.mrf.mxu0
      %2279 = vmatprep.mubr.f32.mxu0 0.0
      %2280 = vmatmul.mubr.f32.gmra.mxu0 %v2142
      %v2281 = vpop.f32.mrf.mxu0
      %v2282 = vadd.f32 %v2100, %v2281
      %v2283 = vpop.f32.mrf.mxu0
      %2284 = vmatprep.mubr.f32.mxu0 0.0
      %2285 = vmatmul.mubr.f32.gmra.mxu0 %v2145
      %v2286 = vpop.f32.mrf.mxu0
      %v2287 = vadd.f32 %v2100, %v2286
      %v2288 = vpop.f32.mrf.mxu0
      %2289 = vmatprep.mubr.f32.mxu0 0.0
      %2290 = vmatmul.mubr.f32.gmra.mxu0 %v2148
      %v2291 = vpop.f32.mrf.mxu0
      %v2292 = vadd.f32 %v2100, %v2291
      %v2293 = vpop.f32.mrf.mxu0
      %2294 = vdwg.mxu0
      %v2295 = vtanh.pop %v2217
      %v2296 = vtanh.pop %v2222
      %v2297 = vtanh.pop %v2227
      %v2298 = vtanh.pop %v2232
      %v2299 = vtanh.pop %v2237
      %v2300 = vtanh.pop %v2242
      %v2301 = vtanh.pop %v2247
      %v2302 = vtanh.pop %v2252
      %v2303 = vtanh.pop %v2257
      %v2304 = vtanh.pop %v2262
      %v2305 = vtanh.pop %v2267
      %v2306 = vtanh.pop %v2272
      %v2307 = vtanh.pop %v2277
      %v2308 = vtanh.pop %v2282
      %v2309 = vtanh.pop %v2287
      %v2310 = vtanh.pop %v2292
      %v2311 = vld [vmem:[%s17] sm:$0xff]
      %v2312 = vld [vmem:[%s17 + $0x8] sm:$0xff]
      %v2313 = vld [vmem:[%s17 + $0x10] sm:$0xff]
      %v2314 = vld [vmem:[%s17 + $0x18] sm:$0xff]
      %v2315 = vld [vmem:[%s17 + $0x20] sm:$0xff]
      %v2316 = vld [vmem:[%s17 + $0x28] sm:$0xff]
      %v2317 = vld [vmem:[%s17 + $0x30] sm:$0xff]
      %v2318 = vld [vmem:[%s17 + $0x38] sm:$0xff]
      %v2319 = vld [vmem:[%s18] sm:$0x1]
      %v2321 = vlaneseq
      %v2322 = vshrl.u32 %v2321, 7
      %v2323 = vsub.s32 0, %v2322
      %v2324 = vrot.slane %v2319, %v2323
      %v2327 = vsel %vm909, %v2295, 0
      %v2330 = vsel %vm909, %v2296, 0
      %v2333 = vsel %vm909, %v2297, 0
      %v2336 = vsel %vm909, %v2298, 0
      %v2339 = vsel %vm909, %v2299, 0
      %v2342 = vsel %vm909, %v2300, 0
      %v2345 = vsel %vm909, %v2301, 0
      %v2348 = vsel %vm909, %v2302, 0
      %v2351 = vsel %vm909, %v2303, 0
      %v2354 = vsel %vm909, %v2304, 0
      %v2357 = vsel %vm909, %v2305, 0
      %v2360 = vsel %vm909, %v2306, 0
      %v2363 = vsel %vm909, %v2307, 0
      %v2366 = vsel %vm909, %v2308, 0
      %v2369 = vsel %vm909, %v2309, 0
      %v2372 = vsel %vm909, %v2310, 0
      %2374 = vmatprep.subr.mxu0 0.0
      %2375 = vmatpush1.msra.mxu0 0.0
      %2376 = vmatprep.subr.mxu0 0.0
      %2377 = vmatpush1.msra.mxu0 0.0
      %2378 = vmatprep.subr.mxu0 0.0
      %2379 = vmatpush1.msra.mxu0 0.0
      %2380 = vmatprep.subr.mxu0 0.0
      %2381 = vmatpush1.msra.mxu0 0.0
      %2382 = vmatprep.subr.mxu0 0.0
      %2383 = vmatpush1.msra.mxu0 0.0
      %2384 = vmatprep.subr.mxu0 0.0
      %2385 = vmatpush1.msra.mxu0 0.0
      %2386 = vmatprep.subr.mxu0 0.0
      %2387 = vmatpush1.msra.mxu0 0.0
      %2388 = vmatprep.subr.mxu0 0.0
      %2389 = vmatpush1.msra.mxu0 0.0
      %2390 = vmatprep.subr.mxu0 0.0
      %2391 = vmatpush1.msra.mxu0 %v2318
      %2392 = vmatprep.subr.mxu0 0.0
      %2393 = vmatpush1.msra.mxu0 %v2317
      %2394 = vmatprep.subr.mxu0 0.0
      %2395 = vmatpush1.msra.mxu0 %v2316
      %2396 = vmatprep.subr.mxu0 0.0
      %2397 = vmatpush1.msra.mxu0 %v2315
      %2398 = vmatprep.subr.mxu0 0.0
      %2399 = vmatpush1.msra.mxu0 %v2314
      %2400 = vmatprep.subr.mxu0 0.0
      %2401 = vmatpush1.msra.mxu0 %v2313
      %2402 = vmatprep.subr.mxu0 0.0
      %2403 = vmatpush1.msra.mxu0 %v2312
      %2404 = vmatprep.subr.mxu0 0.0
      %2405 = vmatpush1.msra.mxu0 %v2311
      %2406 = vmatprep.subr.mxu0 0.0
      %2407 = vmatpush2.msra.mxu0 0.0
      %2408 = vmatprep.subr.mxu0 0.0
      %2409 = vmatpush2.msra.mxu0 0.0
      %2410 = vmatprep.subr.mxu0 0.0
      %2411 = vmatpush2.msra.mxu0 0.0
      %2412 = vmatprep.subr.mxu0 0.0
      %2413 = vmatpush2.msra.mxu0 0.0
      %2414 = vmatprep.subr.mxu0 0.0
      %2415 = vmatpush2.msra.mxu0 0.0
      %2416 = vmatprep.subr.mxu0 0.0
      %2417 = vmatpush2.msra.mxu0 0.0
      %2418 = vmatprep.subr.mxu0 0.0
      %2419 = vmatpush2.msra.mxu0 0.0
      %2420 = vmatprep.subr.mxu0 0.0
      %2421 = vmatpush2.msra.mxu0 0.0
      %2422 = vmatprep.subr.mxu0 0.0
      %2423 = vmatpush2.msra.mxu0 0.0
      %2424 = vmatprep.subr.mxu0 0.0
      %2425 = vmatpush2.msra.mxu0 0.0
      %2426 = vmatprep.subr.mxu0 0.0
      %2427 = vmatpush2.msra.mxu0 0.0
      %2428 = vmatprep.subr.mxu0 0.0
      %2429 = vmatpush2.msra.mxu0 0.0
      %2430 = vmatprep.subr.mxu0 0.0
      %2431 = vmatpush2.msra.mxu0 0.0
      %2432 = vmatprep.subr.mxu0 0.0
      %2433 = vmatpush2.msra.mxu0 0.0
      %2434 = vmatprep.subr.mxu0 0.0
      %2435 = vmatpush2.msra.mxu0 0.0
      %2436 = vmatprep.subr.mxu0 0.0
      %2437 = vmatpush2.msra.mxu0 0.0
      %2438 = vmatprep.mubr.f32.mxu0 0.0
      %2439 = vmatmul.mubr.f32.gmra.mxu0 %v2327
      %v2440 = vpop.f32.mrf.mxu0
      %v2441 = vadd.f32 %v2324, %v2440
      %v2442 = vpop.f32.mrf.mxu0
      %2443 = vmatprep.mubr.f32.mxu0 0.0
      %2444 = vmatmul.mubr.f32.gmra.mxu0 %v2330
      %v2445 = vpop.f32.mrf.mxu0
      %v2446 = vadd.f32 %v2324, %v2445
      %v2447 = vpop.f32.mrf.mxu0
      %2448 = vmatprep.mubr.f32.mxu0 0.0
      %2449 = vmatmul.mubr.f32.gmra.mxu0 %v2333
      %v2450 = vpop.f32.mrf.mxu0
      %v2451 = vadd.f32 %v2324, %v2450
      %v2452 = vpop.f32.mrf.mxu0
      %2453 = vmatprep.mubr.f32.mxu0 0.0
      %2454 = vmatmul.mubr.f32.gmra.mxu0 %v2336
      %v2455 = vpop.f32.mrf.mxu0
      %v2456 = vadd.f32 %v2324, %v2455
      %v2457 = vpop.f32.mrf.mxu0
      %2458 = vmatprep.mubr.f32.mxu0 0.0
      %2459 = vmatmul.mubr.f32.gmra.mxu0 %v2339
      %v2460 = vpop.f32.mrf.mxu0
      %v2461 = vadd.f32 %v2324, %v2460
      %v2462 = vpop.f32.mrf.mxu0
      %2463 = vmatprep.mubr.f32.mxu0 0.0
      %2464 = vmatmul.mubr.f32.gmra.mxu0 %v2342
      %v2465 = vpop.f32.mrf.mxu0
      %v2466 = vadd.f32 %v2324, %v2465
      %v2467 = vpop.f32.mrf.mxu0
      %2468 = vmatprep.mubr.f32.mxu0 0.0
      %2469 = vmatmul.mubr.f32.gmra.mxu0 %v2345
      %v2470 = vpop.f32.mrf.mxu0
      %v2471 = vadd.f32 %v2324, %v2470
      %v2472 = vpop.f32.mrf.mxu0
      %2473 = vmatprep.mubr.f32.mxu0 0.0
      %2474 = vmatmul.mubr.f32.gmra.mxu0 %v2348
      %v2475 = vpop.f32.mrf.mxu0
      %v2476 = vadd.f32 %v2324, %v2475
      %v2477 = vpop.f32.mrf.mxu0
      %2478 = vmatprep.mubr.f32.mxu0 0.0
      %2479 = vmatmul.mubr.f32.gmra.mxu0 %v2351
      %v2480 = vpop.f32.mrf.mxu0
      %v2481 = vadd.f32 %v2324, %v2480
      %v2482 = vpop.f32.mrf.mxu0
      %2483 = vmatprep.mubr.f32.mxu0 0.0
      %2484 = vmatmul.mubr.f32.gmra.mxu0 %v2354
      %v2485 = vpop.f32.mrf.mxu0
      %v2486 = vadd.f32 %v2324, %v2485
      %v2487 = vpop.f32.mrf.mxu0
      %2488 = vmatprep.mubr.f32.mxu0 0.0
      %2489 = vmatmul.mubr.f32.gmra.mxu0 %v2357
      %v2490 = vpop.f32.mrf.mxu0
      %v2491 = vadd.f32 %v2324, %v2490
      %v2492 = vpop.f32.mrf.mxu0
      %2493 = vmatprep.mubr.f32.mxu0 0.0
      %2494 = vmatmul.mubr.f32.gmra.mxu0 %v2360
      %v2495 = vpop.f32.mrf.mxu0
      %v2496 = vadd.f32 %v2324, %v2495
      %v2497 = vpop.f32.mrf.mxu0
      %2498 = vmatprep.mubr.f32.mxu0 0.0
      %2499 = vmatmul.mubr.f32.gmra.mxu0 %v2363
      %v2500 = vpop.f32.mrf.mxu0
      %v2501 = vadd.f32 %v2324, %v2500
      %v2502 = vpop.f32.mrf.mxu0
      %2503 = vmatprep.mubr.f32.mxu0 0.0
      %2504 = vmatmul.mubr.f32.gmra.mxu0 %v2366
      %v2505 = vpop.f32.mrf.mxu0
      %v2506 = vadd.f32 %v2324, %v2505
      %v2507 = vpop.f32.mrf.mxu0
      %2508 = vmatprep.mubr.f32.mxu0 0.0
      %2509 = vmatmul.mubr.f32.gmra.mxu0 %v2369
      %v2510 = vpop.f32.mrf.mxu0
      %v2511 = vadd.f32 %v2324, %v2510
      %v2512 = vpop.f32.mrf.mxu0
      %2513 = vmatprep.mubr.f32.mxu0 0.0
      %2514 = vmatmul.mubr.f32.gmra.mxu0 %v2372
      %v2515 = vpop.f32.mrf.mxu0
      %v2516 = vadd.f32 %v2324, %v2515
      %v2517 = vpop.f32.mrf.mxu0
      %2518 = vdwg.mxu0
      %v2519 = vld [vmem:[%s19] sm:$0xff]
      %v2520 = vld [vmem:[%s19 + $0x8] sm:$0xff]
      %v2521 = vld [vmem:[%s19 + $0x10] sm:$0xff]
      %v2522 = vld [vmem:[%s19 + $0x18] sm:$0xff]
      %v2523 = vld [vmem:[%s19 + $0x20] sm:$0xff]
      %v2524 = vld [vmem:[%s19 + $0x28] sm:$0xff]
      %v2525 = vld [vmem:[%s19 + $0x30] sm:$0xff]
      %v2526 = vld [vmem:[%s19 + $0x38] sm:$0xff]
      %v2527 = vld [vmem:[%s20] sm:$0x1]
      %v2529 = vlaneseq
      %v2530 = vshrl.u32 %v2529, 7
      %v2531 = vsub.s32 0, %v2530
      %v2532 = vrot.slane %v2527, %v2531
      %v2535 = vsel %vm909, %v2441, 0
      %v2538 = vsel %vm909, %v2446, 0
      %v2541 = vsel %vm909, %v2451, 0
      %v2544 = vsel %vm909, %v2456, 0
      %v2547 = vsel %vm909, %v2461, 0
      %v2550 = vsel %vm909, %v2466, 0
      %v2553 = vsel %vm909, %v2471, 0
      %v2556 = vsel %vm909, %v2476, 0
      %v2559 = vsel %vm909, %v2481, 0
      %v2562 = vsel %vm909, %v2486, 0
      %v2565 = vsel %vm909, %v2491, 0
      %v2568 = vsel %vm909, %v2496, 0
      %v2571 = vsel %vm909, %v2501, 0
      %v2574 = vsel %vm909, %v2506, 0
      %v2577 = vsel %vm909, %v2511, 0
      %v2580 = vsel %vm909, %v2516, 0
      %2582 = vmatprep.subr.mxu0 0.0
      %2583 = vmatpush1.msra.mxu0 0.0
      %2584 = vmatprep.subr.mxu0 0.0
      %2585 = vmatpush1.msra.mxu0 0.0
      %2586 = vmatprep.subr.mxu0 0.0
      %2587 = vmatpush1.msra.mxu0 0.0
      %2588 = vmatprep.subr.mxu0 0.0
      %2589 = vmatpush1.msra.mxu0 0.0
      %2590 = vmatprep.subr.mxu0 0.0
      %2591 = vmatpush1.msra.mxu0 0.0
      %2592 = vmatprep.subr.mxu0 0.0
      %2593 = vmatpush1.msra.mxu0 0.0
      %2594 = vmatprep.subr.mxu0 0.0
      %2595 = vmatpush1.msra.mxu0 0.0
      %2596 = vmatprep.subr.mxu0 0.0
      %2597 = vmatpush1.msra.mxu0 0.0
      %2598 = vmatprep.subr.mxu0 0.0
      %2599 = vmatpush1.msra.mxu0 %v2526
      %2600 = vmatprep.subr.mxu0 0.0
      %2601 = vmatpush1.msra.mxu0 %v2525
      %2602 = vmatprep.subr.mxu0 0.0
      %2603 = vmatpush1.msra.mxu0 %v2524
      %2604 = vmatprep.subr.mxu0 0.0
      %2605 = vmatpush1.msra.mxu0 %v2523
      %2606 = vmatprep.subr.mxu0 0.0
      %2607 = vmatpush1.msra.mxu0 %v2522
      %2608 = vmatprep.subr.mxu0 0.0
      %2609 = vmatpush1.msra.mxu0 %v2521
      %2610 = vmatprep.subr.mxu0 0.0
      %2611 = vmatpush1.msra.mxu0 %v2520
      %2612 = vmatprep.subr.mxu0 0.0
      %2613 = vmatpush1.msra.mxu0 %v2519
      %2614 = vmatprep.subr.mxu0 0.0
      %2615 = vmatpush2.msra.mxu0 0.0
      %2616 = vmatprep.subr.mxu0 0.0
      %2617 = vmatpush2.msra.mxu0 0.0
      %2618 = vmatprep.subr.mxu0 0.0
      %2619 = vmatpush2.msra.mxu0 0.0
      %2620 = vmatprep.subr.mxu0 0.0
      %2621 = vmatpush2.msra.mxu0 0.0
      %2622 = vmatprep.subr.mxu0 0.0
      %2623 = vmatpush2.msra.mxu0 0.0
      %2624 = vmatprep.subr.mxu0 0.0
      %2625 = vmatpush2.msra.mxu0 0.0
      %2626 = vmatprep.subr.mxu0 0.0
      %2627 = vmatpush2.msra.mxu0 0.0
      %2628 = vmatprep.subr.mxu0 0.0
      %2629 = vmatpush2.msra.mxu0 0.0
      %2630 = vmatprep.subr.mxu0 0.0
      %2631 = vmatpush2.msra.mxu0 0.0
      %2632 = vmatprep.subr.mxu0 0.0
      %2633 = vmatpush2.msra.mxu0 0.0
      %2634 = vmatprep.subr.mxu0 0.0
      %2635 = vmatpush2.msra.mxu0 0.0
      %2636 = vmatprep.subr.mxu0 0.0
      %2637 = vmatpush2.msra.mxu0 0.0
      %2638 = vmatprep.subr.mxu0 0.0
      %2639 = vmatpush2.msra.mxu0 0.0
      %2640 = vmatprep.subr.mxu0 0.0
      %2641 = vmatpush2.msra.mxu0 0.0
      %2642 = vmatprep.subr.mxu0 0.0
      %2643 = vmatpush2.msra.mxu0 0.0
      %2644 = vmatprep.subr.mxu0 0.0
      %2645 = vmatpush2.msra.mxu0 0.0
      %2646 = vmatprep.mubr.f32.mxu0 0.0
      %2647 = vmatmul.mubr.f32.gmra.mxu0 %v2535
      %v2648 = vpop.f32.mrf.mxu0
      %v2649 = vadd.f32 %v2532, %v2648
      %v2650 = vpop.f32.mrf.mxu0
      %2651 = vmatprep.mubr.f32.mxu0 0.0
      %2652 = vmatmul.mubr.f32.gmra.mxu0 %v2538
      %v2653 = vpop.f32.mrf.mxu0
      %v2654 = vadd.f32 %v2532, %v2653
      %v2655 = vpop.f32.mrf.mxu0
      %2656 = vmatprep.mubr.f32.mxu0 0.0
      %2657 = vmatmul.mubr.f32.gmra.mxu0 %v2541
      %v2658 = vpop.f32.mrf.mxu0
      %v2659 = vadd.f32 %v2532, %v2658
      %v2660 = vpop.f32.mrf.mxu0
      %2661 = vmatprep.mubr.f32.mxu0 0.0
      %2662 = vmatmul.mubr.f32.gmra.mxu0 %v2544
      %v2663 = vpop.f32.mrf.mxu0
      %v2664 = vadd.f32 %v2532, %v2663
      %v2665 = vpop.f32.mrf.mxu0
      %2666 = vmatprep.mubr.f32.mxu0 0.0
      %2667 = vmatmul.mubr.f32.gmra.mxu0 %v2547
      %v2668 = vpop.f32.mrf.mxu0
      %v2669 = vadd.f32 %v2532, %v2668
      %v2670 = vpop.f32.mrf.mxu0
      %2671 = vmatprep.mubr.f32.mxu0 0.0
      %2672 = vmatmul.mubr.f32.gmra.mxu0 %v2550
      %v2673 = vpop.f32.mrf.mxu0
      %v2674 = vadd.f32 %v2532, %v2673
      %v2675 = vpop.f32.mrf.mxu0
      %2676 = vmatprep.mubr.f32.mxu0 0.0
      %2677 = vmatmul.mubr.f32.gmra.mxu0 %v2553
      %v2678 = vpop.f32.mrf.mxu0
      %v2679 = vadd.f32 %v2532, %v2678
      %v2680 = vpop.f32.mrf.mxu0
      %2681 = vmatprep.mubr.f32.mxu0 0.0
      %2682 = vmatmul.mubr.f32.gmra.mxu0 %v2556
      %v2683 = vpop.f32.mrf.mxu0
      %v2684 = vadd.f32 %v2532, %v2683
      %v2685 = vpop.f32.mrf.mxu0
      %2686 = vmatprep.mubr.f32.mxu0 0.0
      %2687 = vmatmul.mubr.f32.gmra.mxu0 %v2559
      %v2688 = vpop.f32.mrf.mxu0
      %v2689 = vadd.f32 %v2532, %v2688
      %v2690 = vpop.f32.mrf.mxu0
      %2691 = vmatprep.mubr.f32.mxu0 0.0
      %2692 = vmatmul.mubr.f32.gmra.mxu0 %v2562
      %v2693 = vpop.f32.mrf.mxu0
      %v2694 = vadd.f32 %v2532, %v2693
      %v2695 = vpop.f32.mrf.mxu0
      %2696 = vmatprep.mubr.f32.mxu0 0.0
      %2697 = vmatmul.mubr.f32.gmra.mxu0 %v2565
      %v2698 = vpop.f32.mrf.mxu0
      %v2699 = vadd.f32 %v2532, %v2698
      %v2700 = vpop.f32.mrf.mxu0
      %2701 = vmatprep.mubr.f32.mxu0 0.0
      %2702 = vmatmul.mubr.f32.gmra.mxu0 %v2568
      %v2703 = vpop.f32.mrf.mxu0
      %v2704 = vadd.f32 %v2532, %v2703
      %v2705 = vpop.f32.mrf.mxu0
      %2706 = vmatprep.mubr.f32.mxu0 0.0
      %2707 = vmatmul.mubr.f32.gmra.mxu0 %v2571
      %v2708 = vpop.f32.mrf.mxu0
      %v2709 = vadd.f32 %v2532, %v2708
      %v2710 = vpop.f32.mrf.mxu0
      %2711 = vmatprep.mubr.f32.mxu0 0.0
      %2712 = vmatmul.mubr.f32.gmra.mxu0 %v2574
      %v2713 = vpop.f32.mrf.mxu0
      %v2714 = vadd.f32 %v2532, %v2713
      %v2715 = vpop.f32.mrf.mxu0
      %2716 = vmatprep.mubr.f32.mxu0 0.0
      %2717 = vmatmul.mubr.f32.gmra.mxu0 %v2577
      %v2718 = vpop.f32.mrf.mxu0
      %v2719 = vadd.f32 %v2532, %v2718
      %v2720 = vpop.f32.mrf.mxu0
      %2721 = vmatprep.mubr.f32.mxu0 0.0
      %2722 = vmatmul.mubr.f32.gmra.mxu0 %v2580
      %v2723 = vpop.f32.mrf.mxu0
      %v2724 = vadd.f32 %v2532, %v2723
      %v2725 = vpop.f32.mrf.mxu0
      %2726 = vdwg.mxu0
      %2727 = vst [vmem:[%s658] sm:$0xff] %v2649
      %2728 = vst [vmem:[%s658 + $0x8] sm:$0xff] %v2654
      %2729 = vst [vmem:[%s658 + $0x10] sm:$0xff] %v2659
      %2730 = vst [vmem:[%s658 + $0x18] sm:$0xff] %v2664
      %2731 = vst [vmem:[%s658 + $0x20] sm:$0xff] %v2669
      %2732 = vst [vmem:[%s658 + $0x28] sm:$0xff] %v2674
      %2733 = vst [vmem:[%s658 + $0x30] sm:$0xff] %v2679
      %2734 = vst [vmem:[%s658 + $0x38] sm:$0xff] %v2684
      %2735 = vst [vmem:[%s658 + $0x40] sm:$0xff] %v2689
      %2736 = vst [vmem:[%s658 + $0x48] sm:$0xff] %v2694
      %2737 = vst [vmem:[%s658 + $0x50] sm:$0xff] %v2699
      %2738 = vst [vmem:[%s658 + $0x58] sm:$0xff] %v2704
      %2739 = vst [vmem:[%s658 + $0x60] sm:$0xff] %v2709
      %2740 = vst [vmem:[%s658 + $0x68] sm:$0xff] %v2714
      %2741 = vst [vmem:[%s658 + $0x70] sm:$0xff] %v2719
      %2742 = vst [vmem:[%s658 + $0x78] sm:$0xff] %v2724
      %s2743 = smul.u32 16, %s32
      %p2744 = scmp.lt.s32.totalorder %s2743, 31
      %s2745 = scalar_select %p2744, %s2743, 31
      %s2746 = smul.addr %s2745, 8
      %s2747 = scalar_lea.vmem %s21, %s2746
      // Predicated region
      $region105: #{forward.1} parent=103 // pred_check
        %p2748 = pneg %p496
      $region106: #{forward.1} parent=103 // pred_check_branch
        %2750 = sbr.rel (%p2748) target = $region108
      $region107: #{forward.1} parent=103 // pred_region
        %s2751 = smul.u32 16, %s32
      $region108: #{forward.1} parent=103 // pred_fallthru
        _
    $region104: #{forward.1} parent=5 // pred_fallthru
      _
    %p2752 = scmp.le.s32.totalorder 2, %s27
    // Predicated region
    $region109: #{forward.1} parent=5 // pred_check
      %p2753 = pneg %p2752
    $region110: #{forward.1} parent=5 // pred_check_branch
      %2755 = sbr.rel (%p2753) target = $region112
    $region111: #{forward.1} parent=5 // pred_region
      %s2756 = ssub.s32 %s27, 2
      // Predicated region
      $region113: #{forward.1} parent=111 // pred_check
        %p2757 = pneg %p502
      $region114: #{forward.1} parent=111 // pred_check_branch
        %2759 = sbr.rel (%p2757) target = $region116
      $region115: #{forward.1} parent=111 // pred_region
        %s2760 = smul.u32 16, %s33
        %p2761 = scmp.lt.s32.totalorder %s2760, 31
        %s2762 = scalar_select %p2761, %s2760, 31
        %s2763 = smul.addr %s2762, 8
        %s2764 = scalar_lea.vmem %s21, %s2763
      $region116: #{forward.1} parent=111 // pred_fallthru
        _
    $region112: #{forward.1} parent=5 // pred_fallthru
      _
  $region6: #{forward.1} parent=0 // loop_footer
    %s31 = sadd.s32 1, %s27
  $region7: #{forward.1} parent=0 // loop_footer_branch
    %26 = sbr.rel target = $region3
  $region8: #{forward.1} parent=0 // loop_exit
    _

</llo_original>
